<compile_context>
chip_gen: v6e
topology: v6e:2x2x1
jax: 0.10.0
libtpu: 0.0.40
codegen_flags: <defaults>
</compile_context>

<pallas_src>
import functools

import jax
import jax.numpy as jnp
from jax import lax
from jax.experimental import pallas as pl
from jax.experimental.pallas import tpu as pltpu

EPS = 1e-5
_TARGET_TILE_ROWS = 512                 # >=512-row tiles reach ~85% of HBM roofline
_VMEM_LIMIT_BYTES = 32 * 1024 * 1024    # v7x scoped default (64 MiB physical)


def _toeplitz_conv_weight(w, W):
    """Fold a PyTorch (Cout, Cin, 3, 3) kernel into a (3*W*Cin, W*Cout) band matrix.

    Row-block dy (dy = 0, 1, 2) applies to input image row (y + dy - 1) and
    implements the 3-tap convolution along W *including* the W zero padding
    (out-of-range taps simply have no entry in the band).

    TODO(synk): the band is ~(W/3)x structural zeros, so MXU FLOPs and weight
    bytes scale O(W^2*C^2); for large W, tile the lane (W) axis and build the
    band for a W-tile + 1-pixel halo only (VMEM-fatal first on v7x's 64 MiB).
    """
    Cout, Cin, KH, KW = w.shape
    assert KH == 3 and KW == 3
    wt = jnp.transpose(w, (2, 3, 1, 0)).astype(jnp.float32)      # (3, 3, Cin, Cout)
    blocks = []
    for dy in range(3):
        m = jnp.zeros((W * Cin, W * Cout), jnp.float32)
        for dx in range(3):
            # input column x_in = x_out + dx - 1 -> diagonal k = 1 - dx
            m = m + jnp.kron(jnp.eye(W, k=1 - dx, dtype=jnp.float32), wt[dy, dx])
        blocks.append(m)
    return jnp.concatenate(blocks, axis=0)                        # (3*W*Cin, W*Cout)


def _conv3x3_tile(a, m_ref, *, H, WC, rows):
    """3x3 conv on a lane-dense tile of whole images via 3 banded MXU matmuls.

    a: (rows, WC) f32 with rows = TB*H (whole images; image boundaries at
    multiples of H).  m_ref: (3*WC, WC) bf16 banded weights; row-block dy
    handles input image row y+dy-1 (W taps + W padding folded into the band).
    """
    # (rows, 1) image-boundary masks (review item: keep masks column-sized).
    ry = lax.broadcasted_iota(jnp.int32, (rows, 1), 0) % H
    not_top = (ry != 0).astype(jnp.float32)         # row y-1 exists in this image
    not_bot = (ry != H - 1).astype(jnp.float32)     # row y+1 exists in this image

    # H taps via sublane rolls (XLU slot); boundary rows zeroed by the masks.
    prev = pltpu.roll(a, 1, 0) * not_top            # input row y-1
    nxt = pltpu.roll(a, rows - 1, 0) * not_bot      # input row y+1

    # Three accumulating K=WC dots against weight row-slices instead of one
    # K=3*WC dot on a lane-concatenated patch buffer (no relayout copy, 3x less
    # patch VMEM).  bf16 operands feed the MXU; accumulation stays f32.
    # TODO(synk): on v6e/v7x fuse two taps into one K=2*WC dot (256-deep MXU)
    # once real (>=256-row / >=256-lane) tiles are in play.
    acc = jnp.dot(prev.astype(jnp.bfloat16), m_ref[pl.ds(0, WC), :],
                  preferred_element_type=jnp.float32)
    acc += jnp.dot(a.astype(jnp.bfloat16), m_ref[pl.ds(WC, WC), :],
                   preferred_element_type=jnp.float32)
    acc += jnp.dot(nxt.astype(jnp.bfloat16), m_ref[pl.ds(2 * WC, WC), :],
                   preferred_element_type=jnp.float32)
    return acc


def _conv_stats_kernel(x_ref, m_ref, y_ref, s_ref, ss_ref, *, H, WC, rows):
    """y = conv3x3(x) per row tile + resident per-lane sum / sum-sq accumulators."""
    @pl.when(pl.program_id(0) == 0)
    def _():
        s_ref[...] = jnp.zeros_like(s_ref)
        ss_ref[...] = jnp.zeros_like(ss_ref)

    y = _conv3x3_tile(x_ref[...], m_ref, H=H, WC=WC, rows=rows)
    y_ref[...] = y
    s_ref[...] += jnp.sum(y, axis=0, keepdims=True)
    ss_ref[...] += jnp.sum(y * y, axis=0, keepdims=True)


def _bn_relu_conv_stats_kernel(y1_ref, m_ref, sc_ref, sh_ref,
                               y2_ref, s_ref, ss_ref, *, H, WC, rows):
    """h = relu(y1*scale + shift); y2 = conv3x3(h); accumulate stats of y2."""
    @pl.when(pl.program_id(0) == 0)
    def _():
        s_ref[...] = jnp.zeros_like(s_ref)
        ss_ref[...] = jnp.zeros_like(ss_ref)

    h = jnp.maximum(y1_ref[...] * sc_ref[...] + sh_ref[...], 0.0)
    y2 = _conv3x3_tile(h, m_ref, H=H, WC=WC, rows=rows)
    y2_ref[...] = y2
    s_ref[...] += jnp.sum(y2, axis=0, keepdims=True)
    ss_ref[...] += jnp.sum(y2 * y2, axis=0, keepdims=True)


def _bn_residual_relu_kernel(y2_ref, x_ref, sc_ref, sh_ref, o_ref):
    """out = relu(y2*scale + shift + identity) — no cross-tile state (parallel)."""
    o_ref[...] = jnp.maximum(
        y2_ref[...] * sc_ref[...] + sh_ref[...] + x_ref[...], 0.0)


def _fold_bn(s_wc, ss_wc, gamma, beta, count, W, C):
    """(1, W*C) per-lane sums -> lane-dense (1, W*C) fused BN scale / shift."""
    ch_sum = jnp.sum(s_wc.reshape(W, C), axis=0)
    ch_sq = jnp.sum(ss_wc.reshape(W, C), axis=0)
    mean = ch_sum / count
    var = jnp.maximum(ch_sq / count - mean * mean, 0.0)   # clamp cancellation
    scale = gamma * lax.rsqrt(var + EPS)
    shift = beta - mean * scale
    tile = lambda v: jnp.tile(v, (W,)).reshape(1, W * C)  # lane idx = w*C + c
    return tile(scale), tile(shift)


def _pick_images_per_tile(N, H):
    """Smallest divisor of N whose (TB*H)-row tile reaches the >=512-row regime."""
    for tb in range(1, N + 1):
        if N % tb == 0 and tb * H >= _TARGET_TILE_ROWS:
            return tb
    return N


@functools.partial(jax.jit, static_argnames=("images_per_tile",))
def resblock(x_nchw, w1, w2, g1, b1, g2, b2, images_per_tile=None):
    """x_nchw: (N, C, H, W); w1/w2: (C, C, 3, 3) PyTorch layout; g/b: (C,)."""
    N, C, H, W = x_nchw.shape
    assert w1.shape == w2.shape == (C, C, 3, 3), "ResBlock needs C_in == C_out"
    WC = W * C

    TB = images_per_tile if images_per_tile is not None else _pick_images_per_tile(N, H)
    assert N % TB == 0, "images_per_tile must divide the batch"
    if (TB * H) % 8 != 0:
        TB = N                        # fall back to one full-array tile ((8,128) rule)
    rows = TB * H                     # rows per grid step (whole images -> no halo)
    T = N // TB                       # grid steps
    count = float(N * H * W)          # BN per-channel element count

    # TODO(synk): if the surrounding model stays NHWC / lane-dense, these two
    # full-tensor boundary transposes (one HBM round trip each) disappear.
    x_ld = jnp.transpose(x_nchw, (0, 2, 3, 1)).astype(jnp.float32).reshape(N * H, WC)

    # Banded conv weights (built under jit: Python kron loops trace once).
    m1 = _toeplitz_conv_weight(w1, W).astype(jnp.bfloat16)        # (3*WC, WC)
    m2 = _toeplitz_conv_weight(w2, W).astype(jnp.bfloat16)

    act_spec = pl.BlockSpec((rows, WC), lambda t: (t, 0))         # lane-dense tiles
    wgt_spec = pl.BlockSpec((3 * WC, WC), lambda t: (0, 0))       # VMEM-resident
    vec_spec = pl.BlockSpec((1, WC), lambda t: (0, 0))            # resident / accum
    act_shape = jax.ShapeDtypeStruct((N * H, WC), jnp.float32)
    stats_shape = jax.ShapeDtypeStruct((1, WC), jnp.float32)
    seq_params = pltpu.CompilerParams(dimension_semantics=("arbitrary",),
                                      vmem_limit_bytes=_VMEM_LIMIT_BYTES)
    par_params = pltpu.CompilerParams(dimension_semantics=("parallel",),
                                      vmem_limit_bytes=_VMEM_LIMIT_BYTES)

    # Pass 1: y1 = conv1(x), plus resident per-lane stats ("arbitrary" grid axis).
    y1, s1, ss1 = pl.pallas_call(
        functools.partial(_conv_stats_kernel, H=H, WC=WC, rows=rows),
        out_shape=(act_shape, stats_shape, stats_shape),
        grid=(T,),
        in_specs=[act_spec, wgt_spec],
        out_specs=(act_spec, vec_spec, vec_spec),
        compiler_params=seq_params,
    )(x_ld, m1)
    scale1, shift1 = _fold_bn(s1, ss1, g1.astype(jnp.float32),
                              b1.astype(jnp.float32), count, W, C)

    # Pass 2: h = relu(bn1(y1)); y2 = conv2(h), plus resident stats of y2.
    y2, s2, ss2 = pl.pallas_call(
        functools.partial(_bn_relu_conv_stats_kernel, H=H, WC=WC, rows=rows),
        out_shape=(act_shape, stats_shape, stats_shape),
        grid=(T,),
        in_specs=[act_spec, wgt_spec, vec_spec, vec_spec],
        out_specs=(act_spec, vec_spec, vec_spec),
        compiler_params=seq_params,
    )(y1, m2, scale1, shift1)
    scale2, shift2 = _fold_bn(s2, ss2, g2.astype(jnp.float32),
                              b2.astype(jnp.float32), count, W, C)

    # Pass 3: out = relu(bn2(y2) + x) — megacore-parallel row tiles.
    out_ld = pl.pallas_call(
        _bn_residual_relu_kernel,
        out_shape=act_shape,
        grid=(T,),
        in_specs=[act_spec, act_spec, vec_spec, vec_spec],
        out_specs=act_spec,
        compiler_params=par_params,
    )(y2, x_ld, scale2, shift2)

    return jnp.transpose(out_ld.reshape(N, H, W, C), (0, 3, 1, 2))  # back to NCHW


def resblock_ref(x, w1, w2, g1, b1, g2, b2):
    """Pure-JAX reference (NCHW, training-mode BN, f32 HIGHEST precision)."""
    def conv(x, w):
        return lax.conv_general_dilated(
            x, w, window_strides=(1, 1), padding=((1, 1), (1, 1)),
            dimension_numbers=("NCHW", "OIHW", "NCHW"),
            precision=lax.Precision.HIGHEST)

    def bn(x, g, b):
        mean = jnp.mean(x, axis=(0, 2, 3), keepdims=True)
        var = jnp.mean(jnp.square(x - mean), axis=(0, 2, 3), keepdims=True)
        return ((x - mean) * lax.rsqrt(var + EPS)
                * g.reshape(1, -1, 1, 1) + b.reshape(1, -1, 1, 1))

    out = jnp.maximum(bn(conv(x, w1), g1, b1), 0.0)
    out = bn(conv(out, w2), g2, b2)
    return jnp.maximum(out + x, 0.0)


if __name__ == "__main__":
    key = jax.random.PRNGKey(0)
    N, C, H, W = 2, 8, 16, 16             # W*C == 128 -> fully lane-dense layout
    k1, k2, k3, k4, k5 = jax.random.split(key, 5)

    x = jax.random.normal(k1, (N, C, H, W), jnp.float32)

    # Deterministic conv weights (kaiming-uniform-style bound, like nn.Conv2d init).
    fan_in = C * 3 * 3
    bound = 1.0 / (fan_in ** 0.5)
    w1 = jax.random.uniform(k2, (C, C, 3, 3), jnp.float32, -bound, bound)
    w2 = jax.random.uniform(k3, (C, C, 3, 3), jnp.float32, -bound, bound)

    # BatchNorm affine params: non-trivial bn1 to exercise the fused scale/shift
    # path; PyTorch init defaults (gamma=1, beta=0) for bn2.
    g1 = jax.random.uniform(k4, (C,), jnp.float32, 0.5, 1.5)
    b1 = jax.random.normal(k5, (C,), jnp.float32) * 0.1
    g2 = jnp.ones((C,), jnp.float32)
    b2 = jnp.zeros((C,), jnp.float32)

    # images_per_tile=1 exercises the multi-step grid (2 row tiles), the
    # "arbitrary" resident stats accumulators, and the constant-index weight
    # residency; the default auto-tiler targets >=512-row tiles at real sizes.
    out = jax.block_until_ready(
        resblock(x, w1, w2, g1, b1, g2, b2, images_per_tile=1))
    ref = jax.block_until_ready(resblock_ref(x, w1, w2, g1, b1, g2, b2))

    assert out.shape == x.shape and out.dtype == jnp.float32
    # Tolerance accounts for bf16 MXU operands in both convs compared against an
    # all-f32 HIGHEST-precision reference; activations / BN math stay f32.
    if not jnp.allclose(out, ref, atol=2e-2, rtol=2e-2):
        raise AssertionError(
            f"mismatch vs reference, max abs err = {float(jnp.max(jnp.abs(out - ref)))}")
    print("KERNEL_OK")
</pallas_src>

<mosaic_0001>
module attributes {stable_mosaic.version = 11 : i64} {
  func.func @_conv_stats_kernel(%arg0: i32, %arg1: memref<16x128xf32, #tpu.memory_space<vmem>>, %arg2: memref<384x128xbf16, #tpu.memory_space<vmem>>, %arg3: memref<16x128xf32, #tpu.memory_space<vmem>>, %arg4: memref<1x128xf32, #tpu.memory_space<vmem>>, %arg5: memref<1x128xf32, #tpu.memory_space<vmem>>) attributes {dimension_semantics = [#tpu.dimension_semantics<arbitrary>], iteration_bounds = array<i64: 2>, scalar_prefetch = 0 : i64, scratch_operands = 0 : i64, tpu.core_type = #tpu.core_type<tc>, window_params = [{transform_indices = @transform_0, window_bounds = array<i64: 16, 128>}, {pipeline_mode = #tpu.pipeline_mode<synchronous>, transform_indices = @transform_1, window_bounds = array<i64: 384, 128>}, {transform_indices = @transform_2, window_bounds = array<i64: 16, 128>}, {pipeline_mode = #tpu.pipeline_mode<synchronous>, transform_indices = @transform_3, window_bounds = array<i64: 1, 128>}, {pipeline_mode = #tpu.pipeline_mode<synchronous>, transform_indices = @transform_4, window_bounds = array<i64: 1, 128>}]} {
    %c0_i32 = arith.constant 0 : i32
    %0 = arith.cmpi eq, %arg0, %c0_i32 : i32
    %1 = arith.extui %0 : i1 to i32
    %c0_i32_0 = arith.constant 0 : i32
    %2 = arith.cmpi ne, %1, %c0_i32_0 : i32
    scf.if %2 {
      %cst_27 = arith.constant 0.000000e+00 : f32
      %58 = vector.broadcast %cst_27 : f32 to vector<1x128xf32>
      %c0_28 = arith.constant 0 : index
      %c0_29 = arith.constant 0 : index
      %59 = vector.load %arg4[%c0_28, %c0_29] : memref<1x128xf32, #tpu.memory_space<vmem>>, vector<1x128xf32>
      tpu.vector_store %arg4[%c0_28, %c0_29], %58 {strides = array<i32>} : memref<1x128xf32, #tpu.memory_space<vmem>>, vector<1x128xf32>,
      %cst_30 = arith.constant 0.000000e+00 : f32
      %60 = vector.broadcast %cst_30 : f32 to vector<1x128xf32>
      %c0_31 = arith.constant 0 : index
      %c0_32 = arith.constant 0 : index
      %61 = vector.load %arg5[%c0_31, %c0_32] : memref<1x128xf32, #tpu.memory_space<vmem>>, vector<1x128xf32>
      tpu.vector_store %arg5[%c0_31, %c0_32], %60 {strides = array<i32>} : memref<1x128xf32, #tpu.memory_space<vmem>>, vector<1x128xf32>,
    } else {
    }
    %c0 = arith.constant 0 : index
    %c0_1 = arith.constant 0 : index
    %3 = vector.load %arg1[%c0, %c0_1] : memref<16x128xf32, #tpu.memory_space<vmem>>, vector<16x128xf32>
    %4 = tpu.iota {dimensions = array<i32: 0>} : vector<16x1xi32>
    %c16_i32 = arith.constant 16 : i32
    %c0_i32_2 = arith.constant 0 : i32
    %5 = arith.cmpi eq, %c16_i32, %c0_i32_2 : i32
    %c1_i32 = arith.constant 1 : i32
    %6 = arith.select %5, %c1_i32, %c16_i32 : i32
    %7 = vector.broadcast %6 : i32 to vector<16x1xi32>
    %8 = arith.remsi %4, %7 : vector<16x1xi32>
    %c0_i32_3 = arith.constant 0 : i32
    %9 = vector.broadcast %c0_i32_3 : i32 to vector<16x1xi32>
    %10 = arith.cmpi ne, %8, %9 : vector<16x1xi32>
    %c0_i32_4 = arith.constant 0 : i32
    %11 = vector.broadcast %c0_i32_4 : i32 to vector<16x1xi32>
    %12 = arith.cmpi slt, %8, %11 : vector<16x1xi32>
    %c0_i32_5 = arith.constant 0 : i32
    %13 = arith.cmpi slt, %6, %c0_i32_5 : i32
    %14 = vector.broadcast %13 : i1 to vector<16x1xi1>
    %15 = vector.broadcast %14 : vector<16x1xi1> to vector<16x1xi1>
    %16 = arith.xori %12, %15 : vector<16x1xi1>
    %17 = arith.andi %16, %10 : vector<16x1xi1>
    %18 = vector.broadcast %6 : i32 to vector<16x1xi32>
    %19 = arith.addi %8, %18 : vector<16x1xi32>
    %20 = arith.select %17, %19, %8 : vector<16x1xi1>, vector<16x1xi32>
    %c0_i32_6 = arith.constant 0 : i32
    %21 = vector.broadcast %c0_i32_6 : i32 to vector<16x1xi32>
    %22 = arith.cmpi ne, %20, %21 : vector<16x1xi32>
    %23 = arith.extui %22 : vector<16x1xi1> to vector<16x1xi32>
    %24 = arith.sitofp %23 : vector<16x1xi32> to vector<16x1xf32>
    %c15_i32 = arith.constant 15 : i32
    %25 = vector.broadcast %c15_i32 : i32 to vector<16x1xi32>
    %26 = arith.cmpi ne, %20, %25 : vector<16x1xi32>
    %27 = arith.extui %26 : vector<16x1xi1> to vector<16x1xi32>
    %28 = arith.sitofp %27 : vector<16x1xi32> to vector<16x1xf32>
    %c1_i32_7 = arith.constant 1 : i32
    %29 = tpu.dynamic_rotate %3 by %c1_i32_7 dim 0 : vector<16x128xf32>, i32 -> vector<16x128xf32>
    %30 = vector.broadcast %24 : vector<16x1xf32> to vector<16x128xf32>
    %31 = arith.mulf %29, %30 : vector<16x128xf32>
    %c15_i32_8 = arith.constant 15 : i32
    %32 = tpu.dynamic_rotate %3 by %c15_i32_8 dim 0 : vector<16x128xf32>, i32 -> vector<16x128xf32>
    %33 = vector.broadcast %28 : vector<16x1xf32> to vector<16x128xf32>
    %34 = arith.mulf %32, %33 : vector<16x128xf32>
    %35 = arith.truncf %31 : vector<16x128xf32> to vector<16x128xbf16>
    %c0_9 = arith.constant 0 : index
    %c0_10 = arith.constant 0 : index
    %36 = vector.load %arg2[%c0_9, %c0_10] : memref<384x128xbf16, #tpu.memory_space<vmem>>, vector<128x128xbf16>
    %cst = arith.constant dense<0.000000e+00> : vector<16x128xf32>
    %37 = tpu.matmul %35, %36, %cst {dimension_numbers = #tpu.dot_dimension_numbers<[1], [0], [0], [1], [0, 0, 1, 1], [], []>} : vector<16x128xbf16>, vector<128x128xbf16>, vector<16x128xf32> -> vector<16x128xf32>
    %38 = arith.truncf %3 : vector<16x128xf32> to vector<16x128xbf16>
    %c128 = arith.constant 128 : index
    %c0_11 = arith.constant 0 : index
    %39 = vector.load %arg2[%c128, %c0_11] : memref<384x128xbf16, #tpu.memory_space<vmem>>, vector<128x128xbf16>
    %cst_12 = arith.constant dense<0.000000e+00> : vector<16x128xf32>
    %40 = tpu.matmul %38, %39, %cst_12 {dimension_numbers = #tpu.dot_dimension_numbers<[1], [0], [0], [1], [0, 0, 1, 1], [], []>} : vector<16x128xbf16>, vector<128x128xbf16>, vector<16x128xf32> -> vector<16x128xf32>
    %41 = arith.addf %37, %40 : vector<16x128xf32>
    %42 = arith.truncf %34 : vector<16x128xf32> to vector<16x128xbf16>
    %c256 = arith.constant 256 : index
    %c0_13 = arith.constant 0 : index
    %43 = vector.load %arg2[%c256, %c0_13] : memref<384x128xbf16, #tpu.memory_space<vmem>>, vector<128x128xbf16>
    %cst_14 = arith.constant dense<0.000000e+00> : vector<16x128xf32>
    %44 = tpu.matmul %42, %43, %cst_14 {dimension_numbers = #tpu.dot_dimension_numbers<[1], [0], [0], [1], [0, 0, 1, 1], [], []>} : vector<16x128xbf16>, vector<128x128xbf16>, vector<16x128xf32> -> vector<16x128xf32>
    %45 = arith.addf %41, %44 : vector<16x128xf32>
    %c0_15 = arith.constant 0 : index
    %c0_16 = arith.constant 0 : index
    %46 = vector.load %arg3[%c0_15, %c0_16] : memref<16x128xf32, #tpu.memory_space<vmem>>, vector<16x128xf32>
    tpu.vector_store %arg3[%c0_15, %c0_16], %45 {strides = array<i32>} : memref<16x128xf32, #tpu.memory_space<vmem>>, vector<16x128xf32>,
    %c0_17 = arith.constant 0 : index
    %c0_18 = arith.constant 0 : index
    %47 = vector.load %arg4[%c0_17, %c0_18] : memref<1x128xf32, #tpu.memory_space<vmem>>, vector<1x128xf32>
    %cst_19 = arith.constant dense<0.000000e+00> : vector<128xf32>
    %48 = vector.multi_reduction <add>, %45, %cst_19 [0] : vector<16x128xf32> to vector<128xf32>
    %49 = vector.shape_cast %48 : vector<128xf32> to vector<1x128xf32>
    %50 = arith.addf %47, %49 : vector<1x128xf32>
    %c0_20 = arith.constant 0 : index
    %c0_21 = arith.constant 0 : index
    %51 = vector.load %arg4[%c0_20, %c0_21] : memref<1x128xf32, #tpu.memory_space<vmem>>, vector<1x128xf32>
    tpu.vector_store %arg4[%c0_20, %c0_21], %50 {strides = array<i32>} : memref<1x128xf32, #tpu.memory_space<vmem>>, vector<1x128xf32>,
    %c0_22 = arith.constant 0 : index
    %c0_23 = arith.constant 0 : index
    %52 = vector.load %arg5[%c0_22, %c0_23] : memref<1x128xf32, #tpu.memory_space<vmem>>, vector<1x128xf32>
    %53 = arith.mulf %45, %45 : vector<16x128xf32>
    %cst_24 = arith.constant dense<0.000000e+00> : vector<128xf32>
    %54 = vector.multi_reduction <add>, %53, %cst_24 [0] : vector<16x128xf32> to vector<128xf32>
    %55 = vector.shape_cast %54 : vector<128xf32> to vector<1x128xf32>
    %56 = arith.addf %52, %55 : vector<1x128xf32>
    %c0_25 = arith.constant 0 : index
    %c0_26 = arith.constant 0 : index
    %57 = vector.load %arg5[%c0_25, %c0_26] : memref<1x128xf32, #tpu.memory_space<vmem>>, vector<1x128xf32>
    tpu.vector_store %arg5[%c0_25, %c0_26], %56 {strides = array<i32>} : memref<1x128xf32, #tpu.memory_space<vmem>>, vector<1x128xf32>,
    return
  }
  func.func @transform_0(%arg0: i32) -> (i32, i32) {
    %c0_i32 = arith.constant 0 : i32
    %c0_i32_0 = arith.constant 0 : i32
    return %arg0, %c0_i32 : i32, i32
  }
  func.func @transform_1(%arg0: i32) -> (i32, i32) {
    %c0_i32 = arith.constant 0 : i32
    %c0_i32_0 = arith.constant 0 : i32
    %c0_i32_1 = arith.constant 0 : i32
    return %c0_i32, %c0_i32_0 : i32, i32
  }
  func.func @transform_2(%arg0: i32) -> (i32, i32) {
    %c0_i32 = arith.constant 0 : i32
    %c0_i32_0 = arith.constant 0 : i32
    return %arg0, %c0_i32 : i32, i32
  }
  func.func @transform_3(%arg0: i32) -> (i32, i32) {
    %c0_i32 = arith.constant 0 : i32
    %c0_i32_0 = arith.constant 0 : i32
    %c0_i32_1 = arith.constant 0 : i32
    return %c0_i32, %c0_i32_0 : i32, i32
  }
  func.func @transform_4(%arg0: i32) -> (i32, i32) {
    %c0_i32 = arith.constant 0 : i32
    %c0_i32_0 = arith.constant 0 : i32
    %c0_i32_1 = arith.constant 0 : i32
    return %c0_i32, %c0_i32_0 : i32, i32
  }
}

module attributes {stable_mosaic.version = 11 : i64} {
  func.func @_bn_relu_conv_stats_kernel(%arg0: i32, %arg1: memref<16x128xf32, #tpu.memory_space<vmem>>, %arg2: memref<384x128xbf16, #tpu.memory_space<vmem>>, %arg3: memref<1x128xf32, #tpu.memory_space<vmem>>, %arg4: memref<1x128xf32, #tpu.memory_space<vmem>>, %arg5: memref<16x128xf32, #tpu.memory_space<vmem>>, %arg6: memref<1x128xf32, #tpu.memory_space<vmem>>, %arg7: memref<1x128xf32, #tpu.memory_space<vmem>>) attributes {dimension_semantics = [#tpu.dimension_semantics<arbitrary>], iteration_bounds = array<i64: 2>, scalar_prefetch = 0 : i64, scratch_operands = 0 : i64, tpu.core_type = #tpu.core_type<tc>, window_params = [{transform_indices = @transform_0, window_bounds = array<i64: 16, 128>}, {pipeline_mode = #tpu.pipeline_mode<synchronous>, transform_indices = @transform_1, window_bounds = array<i64: 384, 128>}, {pipeline_mode = #tpu.pipeline_mode<synchronous>, transform_indices = @transform_2, window_bounds = array<i64: 1, 128>}, {pipeline_mode = #tpu.pipeline_mode<synchronous>, transform_indices = @transform_3, window_bounds = array<i64: 1, 128>}, {transform_indices = @transform_4, window_bounds = array<i64: 16, 128>}, {pipeline_mode = #tpu.pipeline_mode<synchronous>, transform_indices = @transform_5, window_bounds = array<i64: 1, 128>}, {pipeline_mode = #tpu.pipeline_mode<synchronous>, transform_indices = @transform_6, window_bounds = array<i64: 1, 128>}]} {
    %c0_i32 = arith.constant 0 : i32
    %0 = arith.cmpi eq, %arg0, %c0_i32 : i32
    %1 = arith.extui %0 : i1 to i32
    %c0_i32_0 = arith.constant 0 : i32
    %2 = arith.cmpi ne, %1, %c0_i32_0 : i32
    scf.if %2 {
      %cst_32 = arith.constant 0.000000e+00 : f32
      %66 = vector.broadcast %cst_32 : f32 to vector<1x128xf32>
      %c0_33 = arith.constant 0 : index
      %c0_34 = arith.constant 0 : index
      %67 = vector.load %arg6[%c0_33, %c0_34] : memref<1x128xf32, #tpu.memory_space<vmem>>, vector<1x128xf32>
      tpu.vector_store %arg6[%c0_33, %c0_34], %66 {strides = array<i32>} : memref<1x128xf32, #tpu.memory_space<vmem>>, vector<1x128xf32>,
      %cst_35 = arith.constant 0.000000e+00 : f32
      %68 = vector.broadcast %cst_35 : f32 to vector<1x128xf32>
      %c0_36 = arith.constant 0 : index
      %c0_37 = arith.constant 0 : index
      %69 = vector.load %arg7[%c0_36, %c0_37] : memref<1x128xf32, #tpu.memory_space<vmem>>, vector<1x128xf32>
      tpu.vector_store %arg7[%c0_36, %c0_37], %68 {strides = array<i32>} : memref<1x128xf32, #tpu.memory_space<vmem>>, vector<1x128xf32>,
    } else {
    }
    %c0 = arith.constant 0 : index
    %c0_1 = arith.constant 0 : index
    %3 = vector.load %arg1[%c0, %c0_1] : memref<16x128xf32, #tpu.memory_space<vmem>>, vector<16x128xf32>
    %c0_2 = arith.constant 0 : index
    %c0_3 = arith.constant 0 : index
    %4 = vector.load %arg3[%c0_2, %c0_3] : memref<1x128xf32, #tpu.memory_space<vmem>>, vector<1x128xf32>
    %5 = vector.broadcast %4 : vector<1x128xf32> to vector<16x128xf32>
    %6 = arith.mulf %3, %5 : vector<16x128xf32>
    %c0_4 = arith.constant 0 : index
    %c0_5 = arith.constant 0 : index
    %7 = vector.load %arg4[%c0_4, %c0_5] : memref<1x128xf32, #tpu.memory_space<vmem>>, vector<1x128xf32>
    %8 = vector.broadcast %7 : vector<1x128xf32> to vector<16x128xf32>
    %9 = arith.addf %6, %8 : vector<16x128xf32>
    %cst = arith.constant 0.000000e+00 : f32
    %10 = vector.broadcast %cst : f32 to vector<16x128xf32>
    %11 = arith.maximumf %9, %10 : vector<16x128xf32>
    %12 = tpu.iota {dimensions = array<i32: 0>} : vector<16x1xi32>
    %c16_i32 = arith.constant 16 : i32
    %c0_i32_6 = arith.constant 0 : i32
    %13 = arith.cmpi eq, %c16_i32, %c0_i32_6 : i32
    %c1_i32 = arith.constant 1 : i32
    %14 = arith.select %13, %c1_i32, %c16_i32 : i32
    %15 = vector.broadcast %14 : i32 to vector<16x1xi32>
    %16 = arith.remsi %12, %15 : vector<16x1xi32>
    %c0_i32_7 = arith.constant 0 : i32
    %17 = vector.broadcast %c0_i32_7 : i32 to vector<16x1xi32>
    %18 = arith.cmpi ne, %16, %17 : vector<16x1xi32>
    %c0_i32_8 = arith.constant 0 : i32
    %19 = vector.broadcast %c0_i32_8 : i32 to vector<16x1xi32>
    %20 = arith.cmpi slt, %16, %19 : vector<16x1xi32>
    %c0_i32_9 = arith.constant 0 : i32
    %21 = arith.cmpi slt, %14, %c0_i32_9 : i32
    %22 = vector.broadcast %21 : i1 to vector<16x1xi1>
    %23 = vector.broadcast %22 : vector<16x1xi1> to vector<16x1xi1>
    %24 = arith.xori %20, %23 : vector<16x1xi1>
    %25 = arith.andi %24, %18 : vector<16x1xi1>
    %26 = vector.broadcast %14 : i32 to vector<16x1xi32>
    %27 = arith.addi %16, %26 : vector<16x1xi32>
    %28 = arith.select %25, %27, %16 : vector<16x1xi1>, vector<16x1xi32>
    %c0_i32_10 = arith.constant 0 : i32
    %29 = vector.broadcast %c0_i32_10 : i32 to vector<16x1xi32>
    %30 = arith.cmpi ne, %28, %29 : vector<16x1xi32>
    %31 = arith.extui %30 : vector<16x1xi1> to vector<16x1xi32>
    %32 = arith.sitofp %31 : vector<16x1xi32> to vector<16x1xf32>
    %c15_i32 = arith.constant 15 : i32
    %33 = vector.broadcast %c15_i32 : i32 to vector<16x1xi32>
    %34 = arith.cmpi ne, %28, %33 : vector<16x1xi32>
    %35 = arith.extui %34 : vector<16x1xi1> to vector<16x1xi32>
    %36 = arith.sitofp %35 : vector<16x1xi32> to vector<16x1xf32>
    %c1_i32_11 = arith.constant 1 : i32
    %37 = tpu.dynamic_rotate %11 by %c1_i32_11 dim 0 : vector<16x128xf32>, i32 -> vector<16x128xf32>
    %38 = vector.broadcast %32 : vector<16x1xf32> to vector<16x128xf32>
    %39 = arith.mulf %37, %38 : vector<16x128xf32>
    %c15_i32_12 = arith.constant 15 : i32
    %40 = tpu.dynamic_rotate %11 by %c15_i32_12 dim 0 : vector<16x128xf32>, i32 -> vector<16x128xf32>
    %41 = vector.broadcast %36 : vector<16x1xf32> to vector<16x128xf32>
    %42 = arith.mulf %40, %41 : vector<16x128xf32>
    %43 = arith.truncf %39 : vector<16x128xf32> to vector<16x128xbf16>
    %c0_13 = arith.constant 0 : index
    %c0_14 = arith.constant 0 : index
    %44 = vector.load %arg2[%c0_13, %c0_14] : memref<384x128xbf16, #tpu.memory_space<vmem>>, vector<128x128xbf16>
    %cst_15 = arith.constant dense<0.000000e+00> : vector<16x128xf32>
    %45 = tpu.matmul %43, %44, %cst_15 {dimension_numbers = #tpu.dot_dimension_numbers<[1], [0], [0], [1], [0, 0, 1, 1], [], []>} : vector<16x128xbf16>, vector<128x128xbf16>, vector<16x128xf32> -> vector<16x128xf32>
    %46 = arith.truncf %11 : vector<16x128xf32> to vector<16x128xbf16>
    %c128 = arith.constant 128 : index
    %c0_16 = arith.constant 0 : index
    %47 = vector.load %arg2[%c128, %c0_16] : memref<384x128xbf16, #tpu.memory_space<vmem>>, vector<128x128xbf16>
    %cst_17 = arith.constant dense<0.000000e+00> : vector<16x128xf32>
    %48 = tpu.matmul %46, %47, %cst_17 {dimension_numbers = #tpu.dot_dimension_numbers<[1], [0], [0], [1], [0, 0, 1, 1], [], []>} : vector<16x128xbf16>, vector<128x128xbf16>, vector<16x128xf32> -> vector<16x128xf32>
    %49 = arith.addf %45, %48 : vector<16x128xf32>
    %50 = arith.truncf %42 : vector<16x128xf32> to vector<16x128xbf16>
    %c256 = arith.constant 256 : index
    %c0_18 = arith.constant 0 : index
    %51 = vector.load %arg2[%c256, %c0_18] : memref<384x128xbf16, #tpu.memory_space<vmem>>, vector<128x128xbf16>
    %cst_19 = arith.constant dense<0.000000e+00> : vector<16x128xf32>
    %52 = tpu.matmul %50, %51, %cst_19 {dimension_numbers = #tpu.dot_dimension_numbers<[1], [0], [0], [1], [0, 0, 1, 1], [], []>} : vector<16x128xbf16>, vector<128x128xbf16>, vector<16x128xf32> -> vector<16x128xf32>
    %53 = arith.addf %49, %52 : vector<16x128xf32>
    %c0_20 = arith.constant 0 : index
    %c0_21 = arith.constant 0 : index
    %54 = vector.load %arg5[%c0_20, %c0_21] : memref<16x128xf32, #tpu.memory_space<vmem>>, vector<16x128xf32>
    tpu.vector_store %arg5[%c0_20, %c0_21], %53 {strides = array<i32>} : memref<16x128xf32, #tpu.memory_space<vmem>>, vector<16x128xf32>,
    %c0_22 = arith.constant 0 : index
    %c0_23 = arith.constant 0 : index
    %55 = vector.load %arg6[%c0_22, %c0_23] : memref<1x128xf32, #tpu.memory_space<vmem>>, vector<1x128xf32>
    %cst_24 = arith.constant dense<0.000000e+00> : vector<128xf32>
    %56 = vector.multi_reduction <add>, %53, %cst_24 [0] : vector<16x128xf32> to vector<128xf32>
    %57 = vector.shape_cast %56 : vector<128xf32> to vector<1x128xf32>
    %58 = arith.addf %55, %57 : vector<1x128xf32>
    %c0_25 = arith.constant 0 : index
    %c0_26 = arith.constant 0 : index
    %59 = vector.load %arg6[%c0_25, %c0_26] : memref<1x128xf32, #tpu.memory_space<vmem>>, vector<1x128xf32>
    tpu.vector_store %arg6[%c0_25, %c0_26], %58 {strides = array<i32>} : memref<1x128xf32, #tpu.memory_space<vmem>>, vector<1x128xf32>,
    %c0_27 = arith.constant 0 : index
    %c0_28 = arith.constant 0 : index
    %60 = vector.load %arg7[%c0_27, %c0_28] : memref<1x128xf32, #tpu.memory_space<vmem>>, vector<1x128xf32>
    %61 = arith.mulf %53, %53 : vector<16x128xf32>
    %cst_29 = arith.constant dense<0.000000e+00> : vector<128xf32>
    %62 = vector.multi_reduction <add>, %61, %cst_29 [0] : vector<16x128xf32> to vector<128xf32>
    %63 = vector.shape_cast %62 : vector<128xf32> to vector<1x128xf32>
    %64 = arith.addf %60, %63 : vector<1x128xf32>
    %c0_30 = arith.constant 0 : index
    %c0_31 = arith.constant 0 : index
    %65 = vector.load %arg7[%c0_30, %c0_31] : memref<1x128xf32, #tpu.memory_space<vmem>>, vector<1x128xf32>
    tpu.vector_store %arg7[%c0_30, %c0_31], %64 {strides = array<i32>} : memref<1x128xf32, #tpu.memory_space<vmem>>, vector<1x128xf32>,
    return
  }
  func.func @transform_0(%arg0: i32) -> (i32, i32) {
    %c0_i32 = arith.constant 0 : i32
    %c0_i32_0 = arith.constant 0 : i32
    return %arg0, %c0_i32 : i32, i32
  }
  func.func @transform_1(%arg0: i32) -> (i32, i32) {
    %c0_i32 = arith.constant 0 : i32
    %c0_i32_0 = arith.constant 0 : i32
    %c0_i32_1 = arith.constant 0 : i32
    return %c0_i32, %c0_i32_0 : i32, i32
  }
  func.func @transform_2(%arg0: i32) -> (i32, i32) {
    %c0_i32 = arith.constant 0 : i32
    %c0_i32_0 = arith.constant 0 : i32
    %c0_i32_1 = arith.constant 0 : i32
    return %c0_i32, %c0_i32_0 : i32, i32
  }
  func.func @transform_3(%arg0: i32) -> (i32, i32) {
    %c0_i32 = arith.constant 0 : i32
    %c0_i32_0 = arith.constant 0 : i32
    %c0_i32_1 = arith.constant 0 : i32
    return %c0_i32, %c0_i32_0 : i32, i32
  }
  func.func @transform_4(%arg0: i32) -> (i32, i32) {
    %c0_i32 = arith.constant 0 : i32
    %c0_i32_0 = arith.constant 0 : i32
    return %arg0, %c0_i32 : i32, i32
  }
  func.func @transform_5(%arg0: i32) -> (i32, i32) {
    %c0_i32 = arith.constant 0 : i32
    %c0_i32_0 = arith.constant 0 : i32
    %c0_i32_1 = arith.constant 0 : i32
    return %c0_i32, %c0_i32_0 : i32, i32
  }
  func.func @transform_6(%arg0: i32) -> (i32, i32) {
    %c0_i32 = arith.constant 0 : i32
    %c0_i32_0 = arith.constant 0 : i32
    %c0_i32_1 = arith.constant 0 : i32
    return %c0_i32, %c0_i32_0 : i32, i32
  }
}

module attributes {stable_mosaic.version = 11 : i64} {
  func.func @_bn_residual_relu_kernel(%arg0: i32, %arg1: memref<16x128xf32, #tpu.memory_space<vmem>>, %arg2: memref<16x128xf32, #tpu.memory_space<vmem>>, %arg3: memref<1x128xf32, #tpu.memory_space<vmem>>, %arg4: memref<1x128xf32, #tpu.memory_space<vmem>>, %arg5: memref<16x128xf32, #tpu.memory_space<vmem>>) attributes {dimension_semantics = [#tpu.dimension_semantics<parallel>], iteration_bounds = array<i64: 2>, scalar_prefetch = 0 : i64, scratch_operands = 0 : i64, tpu.core_type = #tpu.core_type<tc>, window_params = [{transform_indices = @transform_0, window_bounds = array<i64: 16, 128>}, {transform_indices = @transform_1, window_bounds = array<i64: 16, 128>}, {pipeline_mode = #tpu.pipeline_mode<synchronous>, transform_indices = @transform_2, window_bounds = array<i64: 1, 128>}, {pipeline_mode = #tpu.pipeline_mode<synchronous>, transform_indices = @transform_3, window_bounds = array<i64: 1, 128>}, {transform_indices = @transform_4, window_bounds = array<i64: 16, 128>}]} {
    %c0 = arith.constant 0 : index
    %c0_0 = arith.constant 0 : index
    %0 = vector.load %arg1[%c0, %c0_0] : memref<16x128xf32, #tpu.memory_space<vmem>>, vector<16x128xf32>
    %c0_1 = arith.constant 0 : index
    %c0_2 = arith.constant 0 : index
    %1 = vector.load %arg3[%c0_1, %c0_2] : memref<1x128xf32, #tpu.memory_space<vmem>>, vector<1x128xf32>
    %2 = vector.broadcast %1 : vector<1x128xf32> to vector<16x128xf32>
    %3 = arith.mulf %0, %2 : vector<16x128xf32>
    %c0_3 = arith.constant 0 : index
    %c0_4 = arith.constant 0 : index
    %4 = vector.load %arg4[%c0_3, %c0_4] : memref<1x128xf32, #tpu.memory_space<vmem>>, vector<1x128xf32>
    %5 = vector.broadcast %4 : vector<1x128xf32> to vector<16x128xf32>
    %6 = arith.addf %3, %5 : vector<16x128xf32>
    %c0_5 = arith.constant 0 : index
    %c0_6 = arith.constant 0 : index
    %7 = vector.load %arg2[%c0_5, %c0_6] : memref<16x128xf32, #tpu.memory_space<vmem>>, vector<16x128xf32>
    %8 = arith.addf %6, %7 : vector<16x128xf32>
    %cst = arith.constant 0.000000e+00 : f32
    %9 = vector.broadcast %cst : f32 to vector<16x128xf32>
    %10 = arith.maximumf %8, %9 : vector<16x128xf32>
    %c0_7 = arith.constant 0 : index
    %c0_8 = arith.constant 0 : index
    %11 = vector.load %arg5[%c0_7, %c0_8] : memref<16x128xf32, #tpu.memory_space<vmem>>, vector<16x128xf32>
    tpu.vector_store %arg5[%c0_7, %c0_8], %10 {strides = array<i32>} : memref<16x128xf32, #tpu.memory_space<vmem>>, vector<16x128xf32>,
    return
  }
  func.func @transform_0(%arg0: i32) -> (i32, i32) {
    %c0_i32 = arith.constant 0 : i32
    %c0_i32_0 = arith.constant 0 : i32
    return %arg0, %c0_i32 : i32, i32
  }
  func.func @transform_1(%arg0: i32) -> (i32, i32) {
    %c0_i32 = arith.constant 0 : i32
    %c0_i32_0 = arith.constant 0 : i32
    return %arg0, %c0_i32 : i32, i32
  }
  func.func @transform_2(%arg0: i32) -> (i32, i32) {
    %c0_i32 = arith.constant 0 : i32
    %c0_i32_0 = arith.constant 0 : i32
    %c0_i32_1 = arith.constant 0 : i32
    return %c0_i32, %c0_i32_0 : i32, i32
  }
  func.func @transform_3(%arg0: i32) -> (i32, i32) {
    %c0_i32 = arith.constant 0 : i32
    %c0_i32_0 = arith.constant 0 : i32
    %c0_i32_1 = arith.constant 0 : i32
    return %c0_i32, %c0_i32_0 : i32, i32
  }
  func.func @transform_4(%arg0: i32) -> (i32, i32) {
    %c0_i32 = arith.constant 0 : i32
    %c0_i32_0 = arith.constant 0 : i32
    return %arg0, %c0_i32 : i32, i32
  }
}

</mosaic_0001>

<llo_original>
// kernel: tile.23
$region0: #{tile.23}
  #allocation0 [shape = 's32[1]{0}', space=sflag, size = 0x4, scoped, tag = 'scoped memory for tile.23']
  %s0 = inlined_call_operand.vmem [shape: f32[8], index: 0, kind: input, shape index: {}]
  %s1 = inlined_call_operand.vmem [shape: f32[16,8], index: 1, kind: output, shape index: {}]
  // Predicated region
  $region2: #{tile.23} parent=0 // pred_check
    _
  $region3: #{tile.23} parent=0 // pred_check_branch
    %3 = sbr.rel (0) target = $region5
  $region4: #{tile.23} parent=0 // pred_region
    _
  $region5: #{tile.23} parent=0 // pred_fallthru
    _
  %v4 = vld [vmem:[%s0] ss:$0 sm:$0xff]
  %5 = vst [vmem:[%s1] sm:$0xff] %v4
  %s6 = scalar_lea.vmem %s1, 8
  %7 = vst [vmem:[%s6] sm:$0xff] %v4

// kernel: tile.24
$region0: #{tile.24}
  %s0 = inlined_call_operand.vmem [shape: f32[16,8], index: 0, kind: input, shape index: {}]
  %s1 = inlined_call_operand.vmem [shape: f32[1,128], index: 1, kind: output, shape index: {}]
  $region1: #{tile.24} parent=0
    #allocation0 [shape = 'u8[4096]{0}', space=vmem, size = 0x1000, scoped, tag = 'scoped mem for output reshape']
    %v2 = vld [vmem:[%s0] sm:$0x1]
    %vm3 = vcmask 64512
    %4 = vst.msk [vmem:[#allocation0] sm:$0x1] %vm3, %v2
    %s5 = scalar_lea.vmem %s0, 15
    %v6 = vld [vmem:[%s5] sm:$0x1]
    %7 = vrot.lane.b32.xlu0 %v6, 120
    %v8 = vpop.permute.xlu0 %7
    %vm9 = vcmask 1048512
    %10 = vst.msk [vmem:[#allocation0] sm:$0x1] %vm9, %v8
    %s11 = scalar_lea.vmem %s0, 14
    %v12 = vld [vmem:[%s11] sm:$0x1]
    %13 = vrot.lane.b32.xlu0 %v12, 112
    %v14 = vpop.permute.xlu0 %13
    %vm15 = vcmask 982912
    %16 = vst.msk [vmem:[#allocation0] sm:$0x1] %vm15, %v14
    %s17 = scalar_lea.vmem %s0, 13
    %v18 = vld [vmem:[%s17] sm:$0x1]
    %19 = vrot.lane.b32.xlu0 %v18, 104
    %v20 = vpop.permute.xlu0 %19
    %vm21 = vcmask 917312
    %22 = vst.msk [vmem:[#allocation0] sm:$0x1] %vm21, %v20
    %s23 = scalar_lea.vmem %s0, 12
    %v24 = vld [vmem:[%s23] sm:$0x1]
    %25 = vrot.lane.b32.xlu0 %v24, 96
    %v26 = vpop.permute.xlu0 %25
    %vm27 = vcmask 851712
    %28 = vst.msk [vmem:[#allocation0] sm:$0x1] %vm27, %v26
    %s29 = scalar_lea.vmem %s0, 11
    %v30 = vld [vmem:[%s29] sm:$0x1]
    %31 = vrot.lane.b32.xlu0 %v30, 88
    %v32 = vpop.permute.xlu0 %31
    %vm33 = vcmask 786112
    %34 = vst.msk [vmem:[#allocation0] sm:$0x1] %vm33, %v32
    %s35 = scalar_lea.vmem %s0, 10
    %v36 = vld [vmem:[%s35] sm:$0x1]
    %37 = vrot.lane.b32.xlu0 %v36, 80
    %v38 = vpop.permute.xlu0 %37
    %vm39 = vcmask 720512
    %40 = vst.msk [vmem:[#allocation0] sm:$0x1] %vm39, %v38
    %s41 = scalar_lea.vmem %s0, 9
    %v42 = vld [vmem:[%s41] sm:$0x1]
    %43 = vrot.lane.b32.xlu0 %v42, 72
    %v44 = vpop.permute.xlu0 %43
    %vm45 = vcmask 654912
    %46 = vst.msk [vmem:[#allocation0] sm:$0x1] %vm45, %v44
    %s47 = scalar_lea.vmem %s0, 8
    %v48 = vld [vmem:[%s47] sm:$0x1]
    %49 = vrot.lane.b32.xlu0 %v48, 64
    %v50 = vpop.permute.xlu0 %49
    %vm51 = vcmask 589312
    %52 = vst.msk [vmem:[#allocation0] sm:$0x1] %vm51, %v50
    %s53 = scalar_lea.vmem %s0, 7
    %v54 = vld [vmem:[%s53] sm:$0x1]
    %55 = vrot.lane.b32.xlu0 %v54, 56
    %v56 = vpop.permute.xlu0 %55
    %vm57 = vcmask 523712
    %58 = vst.msk [vmem:[#allocation0] sm:$0x1] %vm57, %v56
    %s59 = scalar_lea.vmem %s0, 6
    %v60 = vld [vmem:[%s59] sm:$0x1]
    %61 = vrot.lane.b32.xlu0 %v60, 48
    %v62 = vpop.permute.xlu0 %61
    %vm63 = vcmask 458112
    %64 = vst.msk [vmem:[#allocation0] sm:$0x1] %vm63, %v62
    %s65 = scalar_lea.vmem %s0, 5
    %v66 = vld [vmem:[%s65] sm:$0x1]
    %67 = vrot.lane.b32.xlu0 %v66, 40
    %v68 = vpop.permute.xlu0 %67
    %vm69 = vcmask 392512
    %70 = vst.msk [vmem:[#allocation0] sm:$0x1] %vm69, %v68
    %s71 = scalar_lea.vmem %s0, 4
    %v72 = vld [vmem:[%s71] sm:$0x1]
    %73 = vrot.lane.b32.xlu0 %v72, 32
    %v74 = vpop.permute.xlu0 %73
    %vm75 = vcmask 326912
    %76 = vst.msk [vmem:[#allocation0] sm:$0x1] %vm75, %v74
    %s77 = scalar_lea.vmem %s0, 3
    %v78 = vld [vmem:[%s77] sm:$0x1]
    %79 = vrot.lane.b32.xlu0 %v78, 24
    %v80 = vpop.permute.xlu0 %79
    %vm81 = vcmask 261312
    %82 = vst.msk [vmem:[#allocation0] sm:$0x1] %vm81, %v80
    %s83 = scalar_lea.vmem %s0, 2
    %v84 = vld [vmem:[%s83] sm:$0x1]
    %85 = vrot.lane.b32.xlu0 %v84, 16
    %v86 = vpop.permute.xlu0 %85
    %vm87 = vcmask 195712
    %88 = vst.msk [vmem:[#allocation0] sm:$0x1] %vm87, %v86
    %s89 = scalar_lea.vmem %s0, 1
    %v90 = vld [vmem:[%s89] sm:$0x1]
    %91 = vrot.lane.b32.xlu0 %v90, 8
    %v92 = vpop.permute.xlu0 %91
    %vm93 = vcmask 130112
    %94 = vst.msk [vmem:[#allocation0] sm:$0x1] %vm93, %v92
    %s96 = sshll.u32 1, 1
    %s97 = ssub.s32 %s96, 1
    %v99 = vld [vmem:[#allocation0] sm:%s97]
    %s100 = sshll.u32 1, 1
    %s101 = ssub.s32 %s100, 1
    %102 = vst [vmem:[%s1] sm:%s101] %v99

// kernel: resblock.3
$region0: #{resblock.3}
  #allocation0 [shape = 'u32[]', space=smem, size = 0x4, offset = 0x4, fixed_abs, tag = 'smem constant byte address 0x4 - core index']
  #allocation1 [shape = 'u32[144,128]{1,0:T(1,128)}', space=vmem, size = 0x12000, scoped, tag = 'internal scratch']
  %s0 = inlined_call_operand.vmem [shape: f32[32,128], index: 0, kind: input, shape index: {}]
  %s1 = inlined_call_operand.vmem [shape: bf16[384,128], index: 1, kind: input, shape index: {}]
  %s2 = inlined_call_operand.vmem [shape: f32[32,128], index: 2, kind: output, shape index: {0}]
  %s3 = inlined_call_operand.vmem [shape: f32[1,128], index: 3, kind: output, shape index: {1}]
  %s4 = inlined_call_operand.vmem [shape: f32[1,128], index: 4, kind: output, shape index: {2}]
  %5 = xla_tuple %s2, %s3, %s4
  %s6 = sld [smem:[#allocation0]]
  $region61: #{resblock.3} parent=0
    _
  %s8 = ssub.s32 1, %s6
  %s9 = scalar_select 0, %s8, %s6
  loop: start=0, step=1, limit=4
  $region2: #{resblock.3} parent=0 // loop_pre_header
    _
  $region3: #{resblock.3} parent=0 // loop_header
    %s11 = sphi 0, %s15
    %p12 = scmp.ge.s32.totalorder %s11, 4
    %s21 = sphi 0, %s23
    %s24 = sphi 0, %s21
    %s25 = sphi 0, %s24
    %s41 = sphi 0, %s25
    %s45 = sphi 0, %s45
    %s47 = sphi 0, %s45
    %s48 = sphi 0, %s47
    %s62 = sphi 0, %s48
    %s68 = sphi 0, %s70
    %s71 = sphi 0, %s68
    %s72 = sphi 0, %s71
    %s88 = sphi 0, %s72
    %s92 = sphi 0, %s92
    %s94 = sphi 0, %s92
    %s95 = sphi 0, %s94
    %s109 = sphi 0, %s95
    %s113 = sphi 0, %s113
    %s115 = sphi 0, %s113
    %s116 = sphi 0, %s115
    %s130 = sphi 0, %s116
  $region4: #{resblock.3} parent=0 // loop_header_branch
    %14 = sbr.rel (%p12) target = $region8
  $region5: #{resblock.3} parent=0 // loop_body
    %s16 = ssub.s32 %s11, 1
    %s17 = ssub.s32 %s11, 2
    %s18 = sadd.s32 %s11, 1
    %s19 = ssub.s32 %s11, %s18
    %p20 = scmp.eq.s32.totalorder %s19, 0
    %s22 = sadd.s32 %s21, 1
    %s23 = scalar_select %p20, %s21, %s22
    %p26 = pneg %p20
    %p27 = scmp.eq.s32.totalorder %s11, 1
    %p28 = por %p26, %p27
    %p29 = scmp.ne.s32.totalorder %s21, %s24
    %p30 = scmp.eq.s32.totalorder %s11, 0
    %p31 = por %p29, %p30
    %p32 = scmp.ne.s32.totalorder %s21, %s24
    %p33 = scmp.eq.s32.totalorder %s16, 1
    %p34 = por %p32, %p33
    %p35 = scmp.ne.s32.totalorder %s24, %s25
    %p36 = scmp.eq.s32.totalorder %s16, 0
    %p37 = por %p35, %p36
    %p38 = scmp.ne.s32.totalorder %s24, %s25
    %p39 = scmp.eq.s32.totalorder %s17, 1
    %p40 = por %p38, %p39
    %p42 = scmp.ne.s32.totalorder %s25, %s41
    %p43 = scmp.eq.s32.totalorder %s17, 0
    %p44 = por %p42, %p43
    %s46 = sadd.s32 %s45, 1
    %p49 = scmp.eq.s32.totalorder %s11, 1
    %p50 = scmp.ne.s32.totalorder %s45, %s47
    %p51 = scmp.eq.s32.totalorder %s11, 0
    %p52 = por %p50, %p51
    %p53 = scmp.ne.s32.totalorder %s45, %s47
    %p54 = scmp.eq.s32.totalorder %s16, 1
    %p55 = por %p53, %p54
    %p56 = scmp.ne.s32.totalorder %s47, %s48
    %p57 = scmp.eq.s32.totalorder %s16, 0
    %p58 = por %p56, %p57
    %p59 = scmp.ne.s32.totalorder %s47, %s48
    %p60 = scmp.eq.s32.totalorder %s17, 1
    %p61 = por %p59, %p60
    %p63 = scmp.ne.s32.totalorder %s48, %s62
    %p64 = scmp.eq.s32.totalorder %s17, 0
    %p65 = por %p63, %p64
    %s66 = ssub.s32 %s11, %s18
    %p67 = scmp.eq.s32.totalorder %s66, 0
    %s69 = sadd.s32 %s68, 1
    %s70 = scalar_select %p67, %s68, %s69
    %p73 = pneg %p67
    %p74 = scmp.eq.s32.totalorder %s11, 1
    %p75 = por %p73, %p74
    %p76 = scmp.ne.s32.totalorder %s68, %s71
    %p77 = scmp.eq.s32.totalorder %s11, 0
    %p78 = por %p76, %p77
    %p79 = scmp.ne.s32.totalorder %s68, %s71
    %p80 = scmp.eq.s32.totalorder %s16, 1
    %p81 = por %p79, %p80
    %p82 = scmp.ne.s32.totalorder %s71, %s72
    %p83 = scmp.eq.s32.totalorder %s16, 0
    %p84 = por %p82, %p83
    %p85 = scmp.ne.s32.totalorder %s71, %s72
    %p86 = scmp.eq.s32.totalorder %s17, 1
    %p87 = por %p85, %p86
    %p89 = scmp.ne.s32.totalorder %s72, %s88
    %p90 = scmp.eq.s32.totalorder %s17, 0
    %p91 = por %p89, %p90
    %s93 = sadd.s32 %s92, 1
    %p96 = scmp.eq.s32.totalorder %s11, 1
    %p97 = scmp.ne.s32.totalorder %s92, %s94
    %p98 = scmp.eq.s32.totalorder %s11, 0
    %p99 = por %p97, %p98
    %p100 = scmp.ne.s32.totalorder %s92, %s94
    %p101 = scmp.eq.s32.totalorder %s16, 1
    %p102 = por %p100, %p101
    %p103 = scmp.ne.s32.totalorder %s94, %s95
    %p104 = scmp.eq.s32.totalorder %s16, 0
    %p105 = por %p103, %p104
    %p106 = scmp.ne.s32.totalorder %s94, %s95
    %p107 = scmp.eq.s32.totalorder %s17, 1
    %p108 = por %p106, %p107
    %p110 = scmp.ne.s32.totalorder %s95, %s109
    %p111 = scmp.eq.s32.totalorder %s17, 0
    %p112 = por %p110, %p111
    %s114 = sadd.s32 %s113, 1
    %p117 = scmp.eq.s32.totalorder %s11, 1
    %p118 = scmp.ne.s32.totalorder %s113, %s115
    %p119 = scmp.eq.s32.totalorder %s11, 0
    %p120 = por %p118, %p119
    %p121 = scmp.ne.s32.totalorder %s113, %s115
    %p122 = scmp.eq.s32.totalorder %s16, 1
    %p123 = por %p121, %p122
    %p124 = scmp.ne.s32.totalorder %s115, %s116
    %p125 = scmp.eq.s32.totalorder %s16, 0
    %p126 = por %p124, %p125
    %p127 = scmp.ne.s32.totalorder %s115, %s116
    %p128 = scmp.eq.s32.totalorder %s17, 1
    %p129 = por %p127, %p128
    %p131 = scmp.ne.s32.totalorder %s116, %s130
    %p132 = scmp.eq.s32.totalorder %s17, 0
    %p133 = por %p131, %p132
    %p134 = scmp.le.s32.totalorder 1, %s11
    %p135 = scmp.lt.s32.totalorder %s11, 3
    %p136 = pnand %p134, %p135
    %p137 = pneg %p136
    // Predicated region
    $region9: #{resblock.3} parent=5 // pred_check
      _
    $region10: #{resblock.3} parent=5 // pred_check_branch
      %139 = sbr.rel (%p136) target = $region12
    $region11: #{resblock.3} parent=5 // pred_region
      %s140 = ssub.s32 %s11, 1
      // Predicated region
      $region13: #{resblock.3} parent=11 // pred_check
        %p141 = pneg %p58
      $region14: #{resblock.3} parent=11 // pred_check_branch
        %143 = sbr.rel (%p141) target = $region16
      $region15: #{resblock.3} parent=11 // pred_region
        _
      $region16: #{resblock.3} parent=11 // pred_fallthru
        _
    $region12: #{resblock.3} parent=5 // pred_fallthru
      _
    %p144 = scmp.lt.s32.totalorder %s11, 2
    // Predicated region
    $region17: #{resblock.3} parent=5 // pred_check
      %p145 = pneg %p144
    $region18: #{resblock.3} parent=5 // pred_check_branch
      %147 = sbr.rel (%p145) target = $region20
    $region19: #{resblock.3} parent=5 // pred_region
      // Predicated region
      $region21: #{resblock.3} parent=19 // pred_check
        %p148 = pneg %p31
      $region22: #{resblock.3} parent=19 // pred_check_branch
        %150 = sbr.rel (%p148) target = $region24
      $region23: #{resblock.3} parent=19 // pred_region
        %s151 = smul.u32 2, %s11
        %p152 = scmp.lt.s32.totalorder %s151, 3
        %s153 = scalar_select %p152, %s151, 3
        %s154 = smul.addr %s153, 8
        %s155 = scalar_lea.vmem %s0, %s154
        %s156 = smul.u32 2, %s11
      $region24: #{resblock.3} parent=19 // pred_fallthru
        _
    $region20: #{resblock.3} parent=5 // pred_fallthru
      _
    %p157 = scmp.le.s32.totalorder 1, %s11
    %p158 = scmp.lt.s32.totalorder %s11, 3
    %p159 = pnand %p157, %p158
    %p160 = pneg %p159
    // Predicated region
    $region25: #{resblock.3} parent=5 // pred_check
      _
    $region26: #{resblock.3} parent=5 // pred_check_branch
      %162 = sbr.rel (%p159) target = $region28
    $region27: #{resblock.3} parent=5 // pred_region
      %s163 = ssub.s32 %s11, 1
      %s164 = smul.u32 2, %s16
      %p165 = scmp.lt.s32.totalorder %s164, 3
      %s166 = scalar_select %p165, %s164, 3
      %s167 = smul.addr %s166, 8
      %s168 = scalar_lea.vmem %s0, %s167
      %p169 = pneg %p37
      %p170 = pneg %p34
      %p171 = pneg %p58
      %p172 = pneg %p55
      %p173 = pneg %p84
      %p174 = pneg %p81
      %s175 = smul.u32 2, %s16
      %p176 = scmp.lt.s32.totalorder %s175, 3
      %s177 = scalar_select %p176, %s175, 3
      %s178 = smul.addr %s177, 8
      %s179 = scalar_lea.vmem %s2, %s178
      %p180 = pneg %p105
      %p181 = pneg %p102
      %p182 = pneg %p126
      %p183 = pneg %p123
      %s184 = smul.u32 2, %s16
      %p185 = scmp.lt.s32.totalorder %s184, 3
      %s186 = scalar_select %p185, %s184, 3
      %s187 = smul.addr %s186, 8
      %s188 = scalar_lea.vmem %s0, %s187
      %s189 = smul.u32 2, %s16
      %s190 = smul.u32 2, %s16
      %p191 = scmp.lt.s32.totalorder %s190, 3
      %s192 = scalar_select %p191, %s190, 3
      %s193 = smul.addr %s192, 8
      %s194 = scalar_lea.vmem %s2, %s193
      %s195 = smul.u32 2, %s16
      %p197 = scmp.eq.s32.totalorder %s16, 0
      // Predicated region
      $region29: #{resblock.3} parent=27 // pred_check
        %p198 = pneg %p197
      $region30: #{resblock.3} parent=27 // pred_check_branch
        %200 = sbr.rel (%p198) target = $region32
      $region31: #{resblock.3} parent=27 // pred_region
        %201 = vst [vmem:[%s3] sm:$0x1] 0.0
        %202 = vst [vmem:[%s4] sm:$0x1] 0.0
      $region32: #{resblock.3} parent=27 // pred_fallthru
        _
      %v203 = vld [vmem:[%s188] sm:$0xff]
      %v204 = vld [vmem:[%s188 + $0x8] sm:$0xff]
      %v205 = vlaneseq
      %v206 = vshrl.u32 %v205, 7
      %v207 = vadd.s32 %v206, 8
      %vm208 = vcmp.lt.s32.totalorder %v206, 0
      %v209 = vsub.s32 0, %v206
      %v210 = vsel %vm208, %v209, %v206
      %v211 = vshrl.u32 %v210, 4
      %v212 = vand.u32 %v210, 15
      %v213 = vsub.s32 0, %v212
      %v214 = vsel %vm208, %v213, %v212
      %vm215 = vcmp.lt.s32.totalorder %v207, 0
      %v216 = vsub.s32 0, %v207
      %v217 = vsel %vm215, %v216, %v207
      %v218 = vshrl.u32 %v217, 4
      %v219 = vand.u32 %v217, 15
      %v220 = vsub.s32 0, %v219
      %v221 = vsel %vm215, %v220, %v219
      %vm222 = vcmp.ne.s32.totalorder %v214, 0
      %vm223 = vcmp.ne.s32.totalorder %v221, 0
      %vm224 = vcmp.lt.s32.totalorder %v214, 0
      %vm225 = vcmp.lt.s32.totalorder %v221, 0
      %vm226 = vmand %vm224, %vm222
      %vm227 = vmand %vm225, %vm223
      %v228 = vadd.s32 %v214, 16
      %v229 = vadd.s32 %v221, 16
      %v230 = vsel %vm226, %v228, %v214
      %v231 = vsel %vm227, %v229, %v221
      %vm232 = vcmp.ne.s32.totalorder %v230, 0
      %vm233 = vcmp.ne.s32.totalorder %v231, 0
      %v234 = vsel %vm232, 1, 0
      %v235 = vsel %vm233, 1, 0
      %v236 = vcvt.s32.f32 %v234
      %v237 = vcvt.s32.f32 %v235
      %vm238 = vcmp.ne.s32.totalorder %v230, 15
      %vm239 = vcmp.ne.s32.totalorder %v231, 15
      %v240 = vsel %vm238, 1, 0
      %v241 = vsel %vm239, 1, 0
      %v242 = vcvt.s32.f32 %v240
      %v243 = vcvt.s32.f32 %v241
      %v244 = vrot.slane %v203, 7
      %v245 = vrot.slane %v204, 7
      %vm246 = vcmp.lt.s32.totalorder %v206, 1
      %v247 = vsel %vm246, %v244, %v245
      %v248 = vsel %vm246, %v245, %v244
      %v249 = vmul.f32 %v248, %v236
      %v250 = vmul.f32 %v247, %v237
      %v251 = vrot.slane %v203, 1
      %v252 = vrot.slane %v204, 1
      %vm253 = vcmp.lt.s32.totalorder %v206, 7
      %v254 = vsel %vm253, %v251, %v252
      %v255 = vsel %vm253, %v252, %v251
      %v256 = vmul.f32 %v254, %v242
      %v257 = vmul.f32 %v255, %v243
      %v258 = vpack.c.bf16 %v250, %v249
      %v259 = vld [vmem:[%s1] sm:$0xf]
      %v260 = vld [vmem:[%s1 + $0x4] sm:$0xf]
      %v261 = vld [vmem:[%s1 + $0x8] sm:$0xf]
      %v262 = vld [vmem:[%s1 + $0xc] sm:$0xf]
      %v263 = vld [vmem:[%s1 + $0x10] sm:$0xf]
      %v264 = vld [vmem:[%s1 + $0x14] sm:$0xf]
      %v265 = vld [vmem:[%s1 + $0x18] sm:$0xf]
      %v266 = vld [vmem:[%s1 + $0x1c] sm:$0xf]
      %v267 = vld [vmem:[%s1 + $0x20] sm:$0xf]
      %v268 = vld [vmem:[%s1 + $0x24] sm:$0xf]
      %v269 = vld [vmem:[%s1 + $0x28] sm:$0xf]
      %v270 = vld [vmem:[%s1 + $0x2c] sm:$0xf]
      %v271 = vld [vmem:[%s1 + $0x30] sm:$0xf]
      %v272 = vld [vmem:[%s1 + $0x34] sm:$0xf]
      %v273 = vld [vmem:[%s1 + $0x38] sm:$0xf]
      %v274 = vld [vmem:[%s1 + $0x3c] sm:$0xf]
      %v275 = vpack.c.bf16 %v204, %v203
      %v276 = vld [vmem:[%s1 + $0x40] sm:$0xf]
      %v277 = vld [vmem:[%s1 + $0x44] sm:$0xf]
      %v278 = vld [vmem:[%s1 + $0x48] sm:$0xf]
      %v279 = vld [vmem:[%s1 + $0x4c] sm:$0xf]
      %v280 = vld [vmem:[%s1 + $0x50] sm:$0xf]
      %v281 = vld [vmem:[%s1 + $0x54] sm:$0xf]
      %v282 = vld [vmem:[%s1 + $0x58] sm:$0xf]
      %v283 = vld [vmem:[%s1 + $0x5c] sm:$0xf]
      %v284 = vld [vmem:[%s1 + $0x60] sm:$0xf]
      %v285 = vld [vmem:[%s1 + $0x64] sm:$0xf]
      %v286 = vld [vmem:[%s1 + $0x68] sm:$0xf]
      %v287 = vld [vmem:[%s1 + $0x6c] sm:$0xf]
      %v288 = vld [vmem:[%s1 + $0x70] sm:$0xf]
      %v289 = vld [vmem:[%s1 + $0x74] sm:$0xf]
      %v290 = vld [vmem:[%s1 + $0x78] sm:$0xf]
      %v291 = vld [vmem:[%s1 + $0x7c] sm:$0xf]
      %v308 = vunpack.c.l.b16 %v276
      %v309 = vunpack.c.l.b16 %v277
      %v310 = vunpack.c.l.b16 %v278
      %v311 = vunpack.c.l.b16 %v279
      %v312 = vunpack.c.l.b16 %v280
      %v313 = vunpack.c.l.b16 %v281
      %v314 = vunpack.c.l.b16 %v282
      %v315 = vunpack.c.l.b16 %v283
      %v316 = vunpack.c.l.b16 %v284
      %v317 = vunpack.c.l.b16 %v285
      %v318 = vunpack.c.l.b16 %v286
      %v319 = vunpack.c.l.b16 %v287
      %v320 = vunpack.c.l.b16 %v288
      %v321 = vunpack.c.l.b16 %v289
      %v322 = vunpack.c.l.b16 %v290
      %v323 = vunpack.c.l.b16 %v291
      %v324 = vpack.c.b16 %v309, %v308
      %v325 = vpack.c.b16 %v311, %v310
      %v326 = vpack.c.b16 %v313, %v312
      %v327 = vpack.c.b16 %v315, %v314
      %v328 = vpack.c.b16 %v317, %v316
      %v329 = vpack.c.b16 %v319, %v318
      %v330 = vpack.c.b16 %v321, %v320
      %v331 = vpack.c.b16 %v323, %v322
      %340 = vmatprep.subr.bf16.mxu0 0
      %341 = vmatpush1.bf16.msra.mxu0 %v331
      %342 = vmatprep.subr.bf16.mxu0 0
      %343 = vmatpush1.bf16.msra.mxu0 %v330
      %344 = vmatprep.subr.bf16.mxu0 0
      %345 = vmatpush1.bf16.msra.mxu0 %v329
      %346 = vmatprep.subr.bf16.mxu0 0
      %347 = vmatpush1.bf16.msra.mxu0 %v328
      %348 = vmatprep.subr.bf16.mxu0 0
      %349 = vmatpush1.bf16.msra.mxu0 %v327
      %350 = vmatprep.subr.bf16.mxu0 0
      %351 = vmatpush1.bf16.msra.mxu0 %v326
      %352 = vmatprep.subr.bf16.mxu0 0
      %353 = vmatpush1.bf16.msra.mxu0 %v325
      %354 = vmatprep.subr.bf16.mxu0 0
      %355 = vmatpush1.bf16.msra.mxu0 %v324
      %356 = vmatprep.subr.bf16.mxu0 0
      %357 = vmatpush2.bf16.msra.mxu0 0
      %358 = vmatprep.subr.bf16.mxu0 0
      %359 = vmatpush2.bf16.msra.mxu0 0
      %360 = vmatprep.subr.bf16.mxu0 0
      %361 = vmatpush2.bf16.msra.mxu0 0
      %362 = vmatprep.subr.bf16.mxu0 0
      %363 = vmatpush2.bf16.msra.mxu0 0
      %364 = vmatprep.subr.bf16.mxu0 0
      %365 = vmatpush2.bf16.msra.mxu0 0
      %366 = vmatprep.subr.bf16.mxu0 0
      %367 = vmatpush2.bf16.msra.mxu0 0
      %368 = vmatprep.subr.bf16.mxu0 0
      %369 = vmatpush2.bf16.msra.mxu0 0
      %370 = vmatprep.subr.bf16.mxu0 0
      %371 = vmatpush2.bf16.msra.mxu0 0
      %372 = vmatprep.mubr.bf16.mxu0 0
      %373 = vmatmul.mubr.bf16.gmra.mxu0 %v275
      %v374 = vpop.f32.mrf.mxu0
      %v375 = vadd.f32 0.0, %v374
      %v376 = vpop.f32.mrf.mxu0
      %v377 = vpop.f32.mrf.mxu0
      %v378 = vadd.f32 0.0, %v377
      %v379 = vpop.f32.mrf.mxu0
      %380 = vdwg.mxu0
      %v397 = vunpack.c.l.b16 %v259
      %v398 = vunpack.c.l.b16 %v260
      %v399 = vunpack.c.l.b16 %v261
      %v400 = vunpack.c.l.b16 %v262
      %v401 = vunpack.c.l.b16 %v263
      %v402 = vunpack.c.l.b16 %v264
      %v403 = vunpack.c.l.b16 %v265
      %v404 = vunpack.c.l.b16 %v266
      %v405 = vunpack.c.l.b16 %v267
      %v406 = vunpack.c.l.b16 %v268
      %v407 = vunpack.c.l.b16 %v269
      %v408 = vunpack.c.l.b16 %v270
      %v409 = vunpack.c.l.b16 %v271
      %v410 = vunpack.c.l.b16 %v272
      %v411 = vunpack.c.l.b16 %v273
      %v412 = vunpack.c.l.b16 %v274
      %v413 = vpack.c.b16 %v398, %v397
      %v414 = vpack.c.b16 %v400, %v399
      %v415 = vpack.c.b16 %v402, %v401
      %v416 = vpack.c.b16 %v404, %v403
      %v417 = vpack.c.b16 %v406, %v405
      %v418 = vpack.c.b16 %v408, %v407
      %v419 = vpack.c.b16 %v410, %v409
      %v420 = vpack.c.b16 %v412, %v411
      %429 = vmatprep.subr.bf16.mxu0 0
      %430 = vmatpush1.bf16.msra.mxu0 %v420
      %431 = vmatprep.subr.bf16.mxu0 0
      %432 = vmatpush1.bf16.msra.mxu0 %v419
      %433 = vmatprep.subr.bf16.mxu0 0
      %434 = vmatpush1.bf16.msra.mxu0 %v418
      %435 = vmatprep.subr.bf16.mxu0 0
      %436 = vmatpush1.bf16.msra.mxu0 %v417
      %437 = vmatprep.subr.bf16.mxu0 0
      %438 = vmatpush1.bf16.msra.mxu0 %v416
      %439 = vmatprep.subr.bf16.mxu0 0
      %440 = vmatpush1.bf16.msra.mxu0 %v415
      %441 = vmatprep.subr.bf16.mxu0 0
      %442 = vmatpush1.bf16.msra.mxu0 %v414
      %443 = vmatprep.subr.bf16.mxu0 0
      %444 = vmatpush1.bf16.msra.mxu0 %v413
      %445 = vmatprep.subr.bf16.mxu0 0
      %446 = vmatpush2.bf16.msra.mxu0 0
      %447 = vmatprep.subr.bf16.mxu0 0
      %448 = vmatpush2.bf16.msra.mxu0 0
      %449 = vmatprep.subr.bf16.mxu0 0
      %450 = vmatpush2.bf16.msra.mxu0 0
      %451 = vmatprep.subr.bf16.mxu0 0
      %452 = vmatpush2.bf16.msra.mxu0 0
      %453 = vmatprep.subr.bf16.mxu0 0
      %454 = vmatpush2.bf16.msra.mxu0 0
      %455 = vmatprep.subr.bf16.mxu0 0
      %456 = vmatpush2.bf16.msra.mxu0 0
      %457 = vmatprep.subr.bf16.mxu0 0
      %458 = vmatpush2.bf16.msra.mxu0 0
      %459 = vmatprep.subr.bf16.mxu0 0
      %460 = vmatpush2.bf16.msra.mxu0 0
      %461 = vmatprep.mubr.bf16.mxu0 0
      %462 = vmatmul.mubr.bf16.gmra.mxu0 %v258
      %v463 = vpop.f32.mrf.mxu0
      %v464 = vadd.f32 %v375, %v463
      %v465 = vpop.f32.mrf.mxu0
      %v466 = vpop.f32.mrf.mxu0
      %v467 = vadd.f32 %v378, %v466
      %v468 = vpop.f32.mrf.mxu0
      %469 = vdwg.mxu0
      %v470 = vpack.c.bf16 %v257, %v256
      %v471 = vld [vmem:[%s1 + $0x80] sm:$0xf]
      %v472 = vld [vmem:[%s1 + $0x84] sm:$0xf]
      %v473 = vld [vmem:[%s1 + $0x88] sm:$0xf]
      %v474 = vld [vmem:[%s1 + $0x8c] sm:$0xf]
      %v475 = vld [vmem:[%s1 + $0x90] sm:$0xf]
      %v476 = vld [vmem:[%s1 + $0x94] sm:$0xf]
      %v477 = vld [vmem:[%s1 + $0x98] sm:$0xf]
      %v478 = vld [vmem:[%s1 + $0x9c] sm:$0xf]
      %v479 = vld [vmem:[%s1 + $0xa0] sm:$0xf]
      %v480 = vld [vmem:[%s1 + $0xa4] sm:$0xf]
      %v481 = vld [vmem:[%s1 + $0xa8] sm:$0xf]
      %v482 = vld [vmem:[%s1 + $0xac] sm:$0xf]
      %v483 = vld [vmem:[%s1 + $0xb0] sm:$0xf]
      %v484 = vld [vmem:[%s1 + $0xb4] sm:$0xf]
      %v485 = vld [vmem:[%s1 + $0xb8] sm:$0xf]
      %v486 = vld [vmem:[%s1 + $0xbc] sm:$0xf]
      %v503 = vunpack.c.l.b16 %v471
      %v504 = vunpack.c.l.b16 %v472
      %v505 = vunpack.c.l.b16 %v473
      %v506 = vunpack.c.l.b16 %v474
      %v507 = vunpack.c.l.b16 %v475
      %v508 = vunpack.c.l.b16 %v476
      %v509 = vunpack.c.l.b16 %v477
      %v510 = vunpack.c.l.b16 %v478
      %v511 = vunpack.c.l.b16 %v479
      %v512 = vunpack.c.l.b16 %v480
      %v513 = vunpack.c.l.b16 %v481
      %v514 = vunpack.c.l.b16 %v482
      %v515 = vunpack.c.l.b16 %v483
      %v516 = vunpack.c.l.b16 %v484
      %v517 = vunpack.c.l.b16 %v485
      %v518 = vunpack.c.l.b16 %v486
      %v519 = vpack.c.b16 %v504, %v503
      %v520 = vpack.c.b16 %v506, %v505
      %v521 = vpack.c.b16 %v508, %v507
      %v522 = vpack.c.b16 %v510, %v509
      %v523 = vpack.c.b16 %v512, %v511
      %v524 = vpack.c.b16 %v514, %v513
      %v525 = vpack.c.b16 %v516, %v515
      %v526 = vpack.c.b16 %v518, %v517
      %535 = vmatprep.subr.bf16.mxu0 0
      %536 = vmatpush1.bf16.msra.mxu0 %v526
      %537 = vmatprep.subr.bf16.mxu0 0
      %538 = vmatpush1.bf16.msra.mxu0 %v525
      %539 = vmatprep.subr.bf16.mxu0 0
      %540 = vmatpush1.bf16.msra.mxu0 %v524
      %541 = vmatprep.subr.bf16.mxu0 0
      %542 = vmatpush1.bf16.msra.mxu0 %v523
      %543 = vmatprep.subr.bf16.mxu0 0
      %544 = vmatpush1.bf16.msra.mxu0 %v522
      %545 = vmatprep.subr.bf16.mxu0 0
      %546 = vmatpush1.bf16.msra.mxu0 %v521
      %547 = vmatprep.subr.bf16.mxu0 0
      %548 = vmatpush1.bf16.msra.mxu0 %v520
      %549 = vmatprep.subr.bf16.mxu0 0
      %550 = vmatpush1.bf16.msra.mxu0 %v519
      %551 = vmatprep.subr.bf16.mxu0 0
      %552 = vmatpush2.bf16.msra.mxu0 0
      %553 = vmatprep.subr.bf16.mxu0 0
      %554 = vmatpush2.bf16.msra.mxu0 0
      %555 = vmatprep.subr.bf16.mxu0 0
      %556 = vmatpush2.bf16.msra.mxu0 0
      %557 = vmatprep.subr.bf16.mxu0 0
      %558 = vmatpush2.bf16.msra.mxu0 0
      %559 = vmatprep.subr.bf16.mxu0 0
      %560 = vmatpush2.bf16.msra.mxu0 0
      %561 = vmatprep.subr.bf16.mxu0 0
      %562 = vmatpush2.bf16.msra.mxu0 0
      %563 = vmatprep.subr.bf16.mxu0 0
      %564 = vmatpush2.bf16.msra.mxu0 0
      %565 = vmatprep.subr.bf16.mxu0 0
      %566 = vmatpush2.bf16.msra.mxu0 0
      %567 = vmatprep.mubr.bf16.mxu0 0
      %568 = vmatmul.mubr.bf16.gmra.mxu0 %v470
      %v569 = vpop.f32.mrf.mxu0
      %v570 = vadd.f32 0.0, %v569
      %v571 = vpop.f32.mrf.mxu0
      %v572 = vpop.f32.mrf.mxu0
      %v573 = vadd.f32 0.0, %v572
      %v574 = vpop.f32.mrf.mxu0
      %575 = vdwg.mxu0
      %v576 = vadd.f32 %v464, %v570
      %v577 = vadd.f32 %v467, %v573
      %578 = vst [vmem:[%s194] sm:$0xff] %v576
      %579 = vst [vmem:[%s194 + $0x8] sm:$0xff] %v577
      %v580 = vld [vmem:[%s3] sm:$0x1]
      %v581 = vadd.f32 %v576, %v577
      %v582 = vrot.slane %v581, 4
      %v583 = vadd.f32 %v581, %v582
      %v584 = vrot.slane %v583, 2
      %v585 = vadd.f32 %v583, %v584
      %v586 = vrot.slane %v585, 1
      %v587 = vadd.f32 %v585, %v586
      %v588 = vadd.f32 %v580, %v587
      %589 = vst [vmem:[%s3] sm:$0x1] %v588
      %v590 = vld [vmem:[%s4] sm:$0x1]
      %v591 = vmul.f32 %v576, %v576
      %v592 = vmul.f32 %v577, %v577
      %v593 = vadd.f32 %v591, %v592
      %v594 = vrot.slane %v593, 4
      %v595 = vadd.f32 %v593, %v594
      %v596 = vrot.slane %v595, 2
      %v597 = vadd.f32 %v595, %v596
      %v598 = vrot.slane %v597, 1
      %v599 = vadd.f32 %v597, %v598
      %v600 = vadd.f32 %v590, %v599
      %601 = vst [vmem:[%s4] sm:$0x1] %v600
      %s602 = smul.u32 2, %s16
      %p603 = scmp.lt.s32.totalorder %s602, 3
      %s604 = scalar_select %p603, %s602, 3
      %s605 = smul.addr %s604, 8
      %s606 = scalar_lea.vmem %s2, %s605
      // Predicated region
      $region33: #{resblock.3} parent=27 // pred_check
        %p607 = pneg %p81
      $region34: #{resblock.3} parent=27 // pred_check_branch
        %609 = sbr.rel (%p607) target = $region36
      $region35: #{resblock.3} parent=27 // pred_region
        %s610 = smul.u32 2, %s16
      $region36: #{resblock.3} parent=27 // pred_fallthru
        _
      // Predicated region
      $region37: #{resblock.3} parent=27 // pred_check
        %p611 = pneg %p102
      $region38: #{resblock.3} parent=27 // pred_check_branch
        %613 = sbr.rel (%p611) target = $region40
      $region39: #{resblock.3} parent=27 // pred_region
        _
      $region40: #{resblock.3} parent=27 // pred_fallthru
        _
      // Predicated region
      $region41: #{resblock.3} parent=27 // pred_check
        %p614 = pneg %p123
      $region42: #{resblock.3} parent=27 // pred_check_branch
        %616 = sbr.rel (%p614) target = $region44
      $region43: #{resblock.3} parent=27 // pred_region
        _
      $region44: #{resblock.3} parent=27 // pred_fallthru
        _
      // Predicated region
      $region45: #{resblock.3} parent=27 // pred_check
        %p617 = pneg %p102
      $region46: #{resblock.3} parent=27 // pred_check_branch
        %619 = sbr.rel (%p617) target = $region48
      $region47: #{resblock.3} parent=27 // pred_region
        _
      $region48: #{resblock.3} parent=27 // pred_fallthru
        _
      // Predicated region
      $region49: #{resblock.3} parent=27 // pred_check
        %p620 = pneg %p123
      $region50: #{resblock.3} parent=27 // pred_check_branch
        %622 = sbr.rel (%p620) target = $region52
      $region51: #{resblock.3} parent=27 // pred_region
        _
      $region52: #{resblock.3} parent=27 // pred_fallthru
        _
    $region28: #{resblock.3} parent=5 // pred_fallthru
      _
    %p623 = scmp.le.s32.totalorder 2, %s11
    // Predicated region
    $region53: #{resblock.3} parent=5 // pred_check
      %p624 = pneg %p623
    $region54: #{resblock.3} parent=5 // pred_check_branch
      %626 = sbr.rel (%p624) target = $region56
    $region55: #{resblock.3} parent=5 // pred_region
      %s627 = ssub.s32 %s11, 2
      // Predicated region
      $region57: #{resblock.3} parent=55 // pred_check
        %p628 = pneg %p87
      $region58: #{resblock.3} parent=55 // pred_check_branch
        %630 = sbr.rel (%p628) target = $region60
      $region59: #{resblock.3} parent=55 // pred_region
        %s631 = smul.u32 2, %s17
        %p632 = scmp.lt.s32.totalorder %s631, 3
        %s633 = scalar_select %p632, %s631, 3
        %s634 = smul.addr %s633, 8
        %s635 = scalar_lea.vmem %s2, %s634
      $region60: #{resblock.3} parent=55 // pred_fallthru
        _
    $region56: #{resblock.3} parent=5 // pred_fallthru
      _
  $region6: #{resblock.3} parent=0 // loop_footer
    %s15 = sadd.s32 1, %s11
  $region7: #{resblock.3} parent=0 // loop_footer_branch
    %10 = sbr.rel target = $region3
  $region8: #{resblock.3} parent=0 // loop_exit
    _

// kernel: resblock.4
$region0: #{resblock.4}
  #allocation0 [shape = 'u32[]', space=smem, size = 0x4, offset = 0x4, fixed_abs, tag = 'smem constant byte address 0x4 - core index']
  #allocation1 [shape = 'u32[144,128]{1,0:T(1,128)}', space=vmem, size = 0x12000, scoped, tag = 'internal scratch']
  %s0 = inlined_call_operand.vmem [shape: f32[32,128], index: 0, kind: input, shape index: {}]
  %s1 = inlined_call_operand.vmem [shape: bf16[384,128], index: 1, kind: input, shape index: {}]
  %s2 = inlined_call_operand.vmem [shape: f32[1,128], index: 2, kind: input, shape index: {}]
  %s3 = inlined_call_operand.vmem [shape: f32[1,128], index: 3, kind: input, shape index: {}]
  %s4 = inlined_call_operand.vmem [shape: f32[32,128], index: 4, kind: output, shape index: {0}]
  %s5 = inlined_call_operand.vmem [shape: f32[1,128], index: 5, kind: output, shape index: {1}]
  %s6 = inlined_call_operand.vmem [shape: f32[1,128], index: 6, kind: output, shape index: {2}]
  %7 = xla_tuple %s4, %s5, %s6
  %s8 = sld [smem:[#allocation0]]
  $region69: #{resblock.4} parent=0
    _
  %s10 = ssub.s32 1, %s8
  %s11 = scalar_select 0, %s10, %s8
  loop: start=0, step=1, limit=4
  $region2: #{resblock.4} parent=0 // loop_pre_header
    _
  $region3: #{resblock.4} parent=0 // loop_header
    %s13 = sphi 0, %s17
    %p14 = scmp.ge.s32.totalorder %s13, 4
    %s23 = sphi 0, %s25
    %s26 = sphi 0, %s23
    %s27 = sphi 0, %s26
    %s43 = sphi 0, %s27
    %s47 = sphi 0, %s47
    %s49 = sphi 0, %s47
    %s50 = sphi 0, %s49
    %s64 = sphi 0, %s50
    %s68 = sphi 0, %s68
    %s70 = sphi 0, %s68
    %s71 = sphi 0, %s70
    %s85 = sphi 0, %s71
    %s89 = sphi 0, %s89
    %s91 = sphi 0, %s89
    %s92 = sphi 0, %s91
    %s106 = sphi 0, %s92
    %s112 = sphi 0, %s114
    %s115 = sphi 0, %s112
    %s116 = sphi 0, %s115
    %s132 = sphi 0, %s116
    %s136 = sphi 0, %s136
    %s138 = sphi 0, %s136
    %s139 = sphi 0, %s138
    %s153 = sphi 0, %s139
    %s157 = sphi 0, %s157
    %s159 = sphi 0, %s157
    %s160 = sphi 0, %s159
    %s174 = sphi 0, %s160
  $region4: #{resblock.4} parent=0 // loop_header_branch
    %16 = sbr.rel (%p14) target = $region8
  $region5: #{resblock.4} parent=0 // loop_body
    %s18 = ssub.s32 %s13, 1
    %s19 = ssub.s32 %s13, 2
    %s20 = sadd.s32 %s13, 1
    %s21 = ssub.s32 %s13, %s20
    %p22 = scmp.eq.s32.totalorder %s21, 0
    %s24 = sadd.s32 %s23, 1
    %s25 = scalar_select %p22, %s23, %s24
    %p28 = pneg %p22
    %p29 = scmp.eq.s32.totalorder %s13, 1
    %p30 = por %p28, %p29
    %p31 = scmp.ne.s32.totalorder %s23, %s26
    %p32 = scmp.eq.s32.totalorder %s13, 0
    %p33 = por %p31, %p32
    %p34 = scmp.ne.s32.totalorder %s23, %s26
    %p35 = scmp.eq.s32.totalorder %s18, 1
    %p36 = por %p34, %p35
    %p37 = scmp.ne.s32.totalorder %s26, %s27
    %p38 = scmp.eq.s32.totalorder %s18, 0
    %p39 = por %p37, %p38
    %p40 = scmp.ne.s32.totalorder %s26, %s27
    %p41 = scmp.eq.s32.totalorder %s19, 1
    %p42 = por %p40, %p41
    %p44 = scmp.ne.s32.totalorder %s27, %s43
    %p45 = scmp.eq.s32.totalorder %s19, 0
    %p46 = por %p44, %p45
    %s48 = sadd.s32 %s47, 1
    %p51 = scmp.eq.s32.totalorder %s13, 1
    %p52 = scmp.ne.s32.totalorder %s47, %s49
    %p53 = scmp.eq.s32.totalorder %s13, 0
    %p54 = por %p52, %p53
    %p55 = scmp.ne.s32.totalorder %s47, %s49
    %p56 = scmp.eq.s32.totalorder %s18, 1
    %p57 = por %p55, %p56
    %p58 = scmp.ne.s32.totalorder %s49, %s50
    %p59 = scmp.eq.s32.totalorder %s18, 0
    %p60 = por %p58, %p59
    %p61 = scmp.ne.s32.totalorder %s49, %s50
    %p62 = scmp.eq.s32.totalorder %s19, 1
    %p63 = por %p61, %p62
    %p65 = scmp.ne.s32.totalorder %s50, %s64
    %p66 = scmp.eq.s32.totalorder %s19, 0
    %p67 = por %p65, %p66
    %s69 = sadd.s32 %s68, 1
    %p72 = scmp.eq.s32.totalorder %s13, 1
    %p73 = scmp.ne.s32.totalorder %s68, %s70
    %p74 = scmp.eq.s32.totalorder %s13, 0
    %p75 = por %p73, %p74
    %p76 = scmp.ne.s32.totalorder %s68, %s70
    %p77 = scmp.eq.s32.totalorder %s18, 1
    %p78 = por %p76, %p77
    %p79 = scmp.ne.s32.totalorder %s70, %s71
    %p80 = scmp.eq.s32.totalorder %s18, 0
    %p81 = por %p79, %p80
    %p82 = scmp.ne.s32.totalorder %s70, %s71
    %p83 = scmp.eq.s32.totalorder %s19, 1
    %p84 = por %p82, %p83
    %p86 = scmp.ne.s32.totalorder %s71, %s85
    %p87 = scmp.eq.s32.totalorder %s19, 0
    %p88 = por %p86, %p87
    %s90 = sadd.s32 %s89, 1
    %p93 = scmp.eq.s32.totalorder %s13, 1
    %p94 = scmp.ne.s32.totalorder %s89, %s91
    %p95 = scmp.eq.s32.totalorder %s13, 0
    %p96 = por %p94, %p95
    %p97 = scmp.ne.s32.totalorder %s89, %s91
    %p98 = scmp.eq.s32.totalorder %s18, 1
    %p99 = por %p97, %p98
    %p100 = scmp.ne.s32.totalorder %s91, %s92
    %p101 = scmp.eq.s32.totalorder %s18, 0
    %p102 = por %p100, %p101
    %p103 = scmp.ne.s32.totalorder %s91, %s92
    %p104 = scmp.eq.s32.totalorder %s19, 1
    %p105 = por %p103, %p104
    %p107 = scmp.ne.s32.totalorder %s92, %s106
    %p108 = scmp.eq.s32.totalorder %s19, 0
    %p109 = por %p107, %p108
    %s110 = ssub.s32 %s13, %s20
    %p111 = scmp.eq.s32.totalorder %s110, 0
    %s113 = sadd.s32 %s112, 1
    %s114 = scalar_select %p111, %s112, %s113
    %p117 = pneg %p111
    %p118 = scmp.eq.s32.totalorder %s13, 1
    %p119 = por %p117, %p118
    %p120 = scmp.ne.s32.totalorder %s112, %s115
    %p121 = scmp.eq.s32.totalorder %s13, 0
    %p122 = por %p120, %p121
    %p123 = scmp.ne.s32.totalorder %s112, %s115
    %p124 = scmp.eq.s32.totalorder %s18, 1
    %p125 = por %p123, %p124
    %p126 = scmp.ne.s32.totalorder %s115, %s116
    %p127 = scmp.eq.s32.totalorder %s18, 0
    %p128 = por %p126, %p127
    %p129 = scmp.ne.s32.totalorder %s115, %s116
    %p130 = scmp.eq.s32.totalorder %s19, 1
    %p131 = por %p129, %p130
    %p133 = scmp.ne.s32.totalorder %s116, %s132
    %p134 = scmp.eq.s32.totalorder %s19, 0
    %p135 = por %p133, %p134
    %s137 = sadd.s32 %s136, 1
    %p140 = scmp.eq.s32.totalorder %s13, 1
    %p141 = scmp.ne.s32.totalorder %s136, %s138
    %p142 = scmp.eq.s32.totalorder %s13, 0
    %p143 = por %p141, %p142
    %p144 = scmp.ne.s32.totalorder %s136, %s138
    %p145 = scmp.eq.s32.totalorder %s18, 1
    %p146 = por %p144, %p145
    %p147 = scmp.ne.s32.totalorder %s138, %s139
    %p148 = scmp.eq.s32.totalorder %s18, 0
    %p149 = por %p147, %p148
    %p150 = scmp.ne.s32.totalorder %s138, %s139
    %p151 = scmp.eq.s32.totalorder %s19, 1
    %p152 = por %p150, %p151
    %p154 = scmp.ne.s32.totalorder %s139, %s153
    %p155 = scmp.eq.s32.totalorder %s19, 0
    %p156 = por %p154, %p155
    %s158 = sadd.s32 %s157, 1
    %p161 = scmp.eq.s32.totalorder %s13, 1
    %p162 = scmp.ne.s32.totalorder %s157, %s159
    %p163 = scmp.eq.s32.totalorder %s13, 0
    %p164 = por %p162, %p163
    %p165 = scmp.ne.s32.totalorder %s157, %s159
    %p166 = scmp.eq.s32.totalorder %s18, 1
    %p167 = por %p165, %p166
    %p168 = scmp.ne.s32.totalorder %s159, %s160
    %p169 = scmp.eq.s32.totalorder %s18, 0
    %p170 = por %p168, %p169
    %p171 = scmp.ne.s32.totalorder %s159, %s160
    %p172 = scmp.eq.s32.totalorder %s19, 1
    %p173 = por %p171, %p172
    %p175 = scmp.ne.s32.totalorder %s160, %s174
    %p176 = scmp.eq.s32.totalorder %s19, 0
    %p177 = por %p175, %p176
    %p178 = scmp.le.s32.totalorder 1, %s13
    %p179 = scmp.lt.s32.totalorder %s13, 3
    %p180 = pnand %p178, %p179
    %p181 = pneg %p180
    // Predicated region
    $region9: #{resblock.4} parent=5 // pred_check
      _
    $region10: #{resblock.4} parent=5 // pred_check_branch
      %183 = sbr.rel (%p180) target = $region12
    $region11: #{resblock.4} parent=5 // pred_region
      %s184 = ssub.s32 %s13, 1
      // Predicated region
      $region13: #{resblock.4} parent=11 // pred_check
        %p185 = pneg %p60
      $region14: #{resblock.4} parent=11 // pred_check_branch
        %187 = sbr.rel (%p185) target = $region16
      $region15: #{resblock.4} parent=11 // pred_region
        _
      $region16: #{resblock.4} parent=11 // pred_fallthru
        _
      // Predicated region
      $region17: #{resblock.4} parent=11 // pred_check
        %p188 = pneg %p81
      $region18: #{resblock.4} parent=11 // pred_check_branch
        %190 = sbr.rel (%p188) target = $region20
      $region19: #{resblock.4} parent=11 // pred_region
        _
      $region20: #{resblock.4} parent=11 // pred_fallthru
        _
      // Predicated region
      $region21: #{resblock.4} parent=11 // pred_check
        %p191 = pneg %p102
      $region22: #{resblock.4} parent=11 // pred_check_branch
        %193 = sbr.rel (%p191) target = $region24
      $region23: #{resblock.4} parent=11 // pred_region
        _
      $region24: #{resblock.4} parent=11 // pred_fallthru
        _
    $region12: #{resblock.4} parent=5 // pred_fallthru
      _
    %p194 = scmp.lt.s32.totalorder %s13, 2
    // Predicated region
    $region25: #{resblock.4} parent=5 // pred_check
      %p195 = pneg %p194
    $region26: #{resblock.4} parent=5 // pred_check_branch
      %197 = sbr.rel (%p195) target = $region28
    $region27: #{resblock.4} parent=5 // pred_region
      // Predicated region
      $region29: #{resblock.4} parent=27 // pred_check
        %p198 = pneg %p33
      $region30: #{resblock.4} parent=27 // pred_check_branch
        %200 = sbr.rel (%p198) target = $region32
      $region31: #{resblock.4} parent=27 // pred_region
        %s201 = smul.u32 2, %s13
        %p202 = scmp.lt.s32.totalorder %s201, 3
        %s203 = scalar_select %p202, %s201, 3
        %s204 = smul.addr %s203, 8
        %s205 = scalar_lea.vmem %s0, %s204
        %s206 = smul.u32 2, %s13
      $region32: #{resblock.4} parent=27 // pred_fallthru
        _
    $region28: #{resblock.4} parent=5 // pred_fallthru
      _
    %p207 = scmp.le.s32.totalorder 1, %s13
    %p208 = scmp.lt.s32.totalorder %s13, 3
    %p209 = pnand %p207, %p208
    %p210 = pneg %p209
    // Predicated region
    $region33: #{resblock.4} parent=5 // pred_check
      _
    $region34: #{resblock.4} parent=5 // pred_check_branch
      %212 = sbr.rel (%p209) target = $region36
    $region35: #{resblock.4} parent=5 // pred_region
      %s213 = ssub.s32 %s13, 1
      %s214 = smul.u32 2, %s18
      %p215 = scmp.lt.s32.totalorder %s214, 3
      %s216 = scalar_select %p215, %s214, 3
      %s217 = smul.addr %s216, 8
      %s218 = scalar_lea.vmem %s0, %s217
      %p219 = pneg %p39
      %p220 = pneg %p36
      %p221 = pneg %p60
      %p222 = pneg %p57
      %p223 = pneg %p81
      %p224 = pneg %p78
      %p225 = pneg %p102
      %p226 = pneg %p99
      %p227 = pneg %p128
      %p228 = pneg %p125
      %s229 = smul.u32 2, %s18
      %p230 = scmp.lt.s32.totalorder %s229, 3
      %s231 = scalar_select %p230, %s229, 3
      %s232 = smul.addr %s231, 8
      %s233 = scalar_lea.vmem %s4, %s232
      %p234 = pneg %p149
      %p235 = pneg %p146
      %p236 = pneg %p170
      %p237 = pneg %p167
      %s238 = smul.u32 2, %s18
      %p239 = scmp.lt.s32.totalorder %s238, 3
      %s240 = scalar_select %p239, %s238, 3
      %s241 = smul.addr %s240, 8
      %s242 = scalar_lea.vmem %s0, %s241
      %s243 = smul.u32 2, %s18
      %s244 = smul.u32 2, %s18
      %p245 = scmp.lt.s32.totalorder %s244, 3
      %s246 = scalar_select %p245, %s244, 3
      %s247 = smul.addr %s246, 8
      %s248 = scalar_lea.vmem %s4, %s247
      %s249 = smul.u32 2, %s18
      %p251 = scmp.eq.s32.totalorder %s18, 0
      // Predicated region
      $region37: #{resblock.4} parent=35 // pred_check
        %p252 = pneg %p251
      $region38: #{resblock.4} parent=35 // pred_check_branch
        %254 = sbr.rel (%p252) target = $region40
      $region39: #{resblock.4} parent=35 // pred_region
        %255 = vst [vmem:[%s5] sm:$0x1] 0.0
        %256 = vst [vmem:[%s6] sm:$0x1] 0.0
      $region40: #{resblock.4} parent=35 // pred_fallthru
        _
      %v257 = vld [vmem:[%s242] sm:$0xff]
      %v258 = vld [vmem:[%s242 + $0x8] sm:$0xff]
      %v259 = vld [vmem:[%s2] sm:$0x1]
      %v261 = vlaneseq
      %v262 = vshrl.u32 %v261, 7
      %v263 = vsub.s32 0, %v262
      %v264 = vrot.slane %v259, %v263
      %v266 = vmul.f32 %v257, %v264
      %v267 = vmul.f32 %v258, %v264
      %v268 = vld [vmem:[%s3] sm:$0x1]
      %v270 = vlaneseq
      %v271 = vshrl.u32 %v270, 7
      %v272 = vsub.s32 0, %v271
      %v273 = vrot.slane %v268, %v272
      %v275 = vadd.f32 %v266, %v273
      %v276 = vadd.f32 %v267, %v273
      %v277 = vmax.f32 %v275, 0.0
      %v278 = vmax.f32 %v276, 0.0
      %v279 = vlaneseq
      %v280 = vshrl.u32 %v279, 7
      %v281 = vadd.s32 %v280, 8
      %vm282 = vcmp.lt.s32.totalorder %v280, 0
      %v283 = vsub.s32 0, %v280
      %v284 = vsel %vm282, %v283, %v280
      %v285 = vshrl.u32 %v284, 4
      %v286 = vand.u32 %v284, 15
      %v287 = vsub.s32 0, %v286
      %v288 = vsel %vm282, %v287, %v286
      %vm289 = vcmp.lt.s32.totalorder %v281, 0
      %v290 = vsub.s32 0, %v281
      %v291 = vsel %vm289, %v290, %v281
      %v292 = vshrl.u32 %v291, 4
      %v293 = vand.u32 %v291, 15
      %v294 = vsub.s32 0, %v293
      %v295 = vsel %vm289, %v294, %v293
      %vm296 = vcmp.ne.s32.totalorder %v288, 0
      %vm297 = vcmp.ne.s32.totalorder %v295, 0
      %vm298 = vcmp.lt.s32.totalorder %v288, 0
      %vm299 = vcmp.lt.s32.totalorder %v295, 0
      %vm300 = vmand %vm298, %vm296
      %vm301 = vmand %vm299, %vm297
      %v302 = vadd.s32 %v288, 16
      %v303 = vadd.s32 %v295, 16
      %v304 = vsel %vm300, %v302, %v288
      %v305 = vsel %vm301, %v303, %v295
      %vm306 = vcmp.ne.s32.totalorder %v304, 0
      %vm307 = vcmp.ne.s32.totalorder %v305, 0
      %v308 = vsel %vm306, 1, 0
      %v309 = vsel %vm307, 1, 0
      %v310 = vcvt.s32.f32 %v308
      %v311 = vcvt.s32.f32 %v309
      %vm312 = vcmp.ne.s32.totalorder %v304, 15
      %vm313 = vcmp.ne.s32.totalorder %v305, 15
      %v314 = vsel %vm312, 1, 0
      %v315 = vsel %vm313, 1, 0
      %v316 = vcvt.s32.f32 %v314
      %v317 = vcvt.s32.f32 %v315
      %v318 = vrot.slane %v277, 7
      %v319 = vrot.slane %v278, 7
      %vm320 = vcmp.lt.s32.totalorder %v280, 1
      %v321 = vsel %vm320, %v318, %v319
      %v322 = vsel %vm320, %v319, %v318
      %v323 = vmul.f32 %v322, %v310
      %v324 = vmul.f32 %v321, %v311
      %v325 = vrot.slane %v277, 1
      %v326 = vrot.slane %v278, 1
      %vm327 = vcmp.lt.s32.totalorder %v280, 7
      %v328 = vsel %vm327, %v325, %v326
      %v329 = vsel %vm327, %v326, %v325
      %v330 = vmul.f32 %v328, %v316
      %v331 = vmul.f32 %v329, %v317
      %v332 = vpack.c.bf16 %v324, %v323
      %v333 = vld [vmem:[%s1] sm:$0xf]
      %v334 = vld [vmem:[%s1 + $0x4] sm:$0xf]
      %v335 = vld [vmem:[%s1 + $0x8] sm:$0xf]
      %v336 = vld [vmem:[%s1 + $0xc] sm:$0xf]
      %v337 = vld [vmem:[%s1 + $0x10] sm:$0xf]
      %v338 = vld [vmem:[%s1 + $0x14] sm:$0xf]
      %v339 = vld [vmem:[%s1 + $0x18] sm:$0xf]
      %v340 = vld [vmem:[%s1 + $0x1c] sm:$0xf]
      %v341 = vld [vmem:[%s1 + $0x20] sm:$0xf]
      %v342 = vld [vmem:[%s1 + $0x24] sm:$0xf]
      %v343 = vld [vmem:[%s1 + $0x28] sm:$0xf]
      %v344 = vld [vmem:[%s1 + $0x2c] sm:$0xf]
      %v345 = vld [vmem:[%s1 + $0x30] sm:$0xf]
      %v346 = vld [vmem:[%s1 + $0x34] sm:$0xf]
      %v347 = vld [vmem:[%s1 + $0x38] sm:$0xf]
      %v348 = vld [vmem:[%s1 + $0x3c] sm:$0xf]
      %v349 = vpack.c.bf16 %v278, %v277
      %v350 = vld [vmem:[%s1 + $0x40] sm:$0xf]
      %v351 = vld [vmem:[%s1 + $0x44] sm:$0xf]
      %v352 = vld [vmem:[%s1 + $0x48] sm:$0xf]
      %v353 = vld [vmem:[%s1 + $0x4c] sm:$0xf]
      %v354 = vld [vmem:[%s1 + $0x50] sm:$0xf]
      %v355 = vld [vmem:[%s1 + $0x54] sm:$0xf]
      %v356 = vld [vmem:[%s1 + $0x58] sm:$0xf]
      %v357 = vld [vmem:[%s1 + $0x5c] sm:$0xf]
      %v358 = vld [vmem:[%s1 + $0x60] sm:$0xf]
      %v359 = vld [vmem:[%s1 + $0x64] sm:$0xf]
      %v360 = vld [vmem:[%s1 + $0x68] sm:$0xf]
      %v361 = vld [vmem:[%s1 + $0x6c] sm:$0xf]
      %v362 = vld [vmem:[%s1 + $0x70] sm:$0xf]
      %v363 = vld [vmem:[%s1 + $0x74] sm:$0xf]
      %v364 = vld [vmem:[%s1 + $0x78] sm:$0xf]
      %v365 = vld [vmem:[%s1 + $0x7c] sm:$0xf]
      %v382 = vunpack.c.l.b16 %v350
      %v383 = vunpack.c.l.b16 %v351
      %v384 = vunpack.c.l.b16 %v352
      %v385 = vunpack.c.l.b16 %v353
      %v386 = vunpack.c.l.b16 %v354
      %v387 = vunpack.c.l.b16 %v355
      %v388 = vunpack.c.l.b16 %v356
      %v389 = vunpack.c.l.b16 %v357
      %v390 = vunpack.c.l.b16 %v358
      %v391 = vunpack.c.l.b16 %v359
      %v392 = vunpack.c.l.b16 %v360
      %v393 = vunpack.c.l.b16 %v361
      %v394 = vunpack.c.l.b16 %v362
      %v395 = vunpack.c.l.b16 %v363
      %v396 = vunpack.c.l.b16 %v364
      %v397 = vunpack.c.l.b16 %v365
      %v398 = vpack.c.b16 %v383, %v382
      %v399 = vpack.c.b16 %v385, %v384
      %v400 = vpack.c.b16 %v387, %v386
      %v401 = vpack.c.b16 %v389, %v388
      %v402 = vpack.c.b16 %v391, %v390
      %v403 = vpack.c.b16 %v393, %v392
      %v404 = vpack.c.b16 %v395, %v394
      %v405 = vpack.c.b16 %v397, %v396
      %414 = vmatprep.subr.bf16.mxu0 0
      %415 = vmatpush1.bf16.msra.mxu0 %v405
      %416 = vmatprep.subr.bf16.mxu0 0
      %417 = vmatpush1.bf16.msra.mxu0 %v404
      %418 = vmatprep.subr.bf16.mxu0 0
      %419 = vmatpush1.bf16.msra.mxu0 %v403
      %420 = vmatprep.subr.bf16.mxu0 0
      %421 = vmatpush1.bf16.msra.mxu0 %v402
      %422 = vmatprep.subr.bf16.mxu0 0
      %423 = vmatpush1.bf16.msra.mxu0 %v401
      %424 = vmatprep.subr.bf16.mxu0 0
      %425 = vmatpush1.bf16.msra.mxu0 %v400
      %426 = vmatprep.subr.bf16.mxu0 0
      %427 = vmatpush1.bf16.msra.mxu0 %v399
      %428 = vmatprep.subr.bf16.mxu0 0
      %429 = vmatpush1.bf16.msra.mxu0 %v398
      %430 = vmatprep.subr.bf16.mxu0 0
      %431 = vmatpush2.bf16.msra.mxu0 0
      %432 = vmatprep.subr.bf16.mxu0 0
      %433 = vmatpush2.bf16.msra.mxu0 0
      %434 = vmatprep.subr.bf16.mxu0 0
      %435 = vmatpush2.bf16.msra.mxu0 0
      %436 = vmatprep.subr.bf16.mxu0 0
      %437 = vmatpush2.bf16.msra.mxu0 0
      %438 = vmatprep.subr.bf16.mxu0 0
      %439 = vmatpush2.bf16.msra.mxu0 0
      %440 = vmatprep.subr.bf16.mxu0 0
      %441 = vmatpush2.bf16.msra.mxu0 0
      %442 = vmatprep.subr.bf16.mxu0 0
      %443 = vmatpush2.bf16.msra.mxu0 0
      %444 = vmatprep.subr.bf16.mxu0 0
      %445 = vmatpush2.bf16.msra.mxu0 0
      %446 = vmatprep.mubr.bf16.mxu0 0
      %447 = vmatmul.mubr.bf16.gmra.mxu0 %v349
      %v448 = vpop.f32.mrf.mxu0
      %v449 = vadd.f32 0.0, %v448
      %v450 = vpop.f32.mrf.mxu0
      %v451 = vpop.f32.mrf.mxu0
      %v452 = vadd.f32 0.0, %v451
      %v453 = vpop.f32.mrf.mxu0
      %454 = vdwg.mxu0
      %v471 = vunpack.c.l.b16 %v333
      %v472 = vunpack.c.l.b16 %v334
      %v473 = vunpack.c.l.b16 %v335
      %v474 = vunpack.c.l.b16 %v336
      %v475 = vunpack.c.l.b16 %v337
      %v476 = vunpack.c.l.b16 %v338
      %v477 = vunpack.c.l.b16 %v339
      %v478 = vunpack.c.l.b16 %v340
      %v479 = vunpack.c.l.b16 %v341
      %v480 = vunpack.c.l.b16 %v342
      %v481 = vunpack.c.l.b16 %v343
      %v482 = vunpack.c.l.b16 %v344
      %v483 = vunpack.c.l.b16 %v345
      %v484 = vunpack.c.l.b16 %v346
      %v485 = vunpack.c.l.b16 %v347
      %v486 = vunpack.c.l.b16 %v348
      %v487 = vpack.c.b16 %v472, %v471
      %v488 = vpack.c.b16 %v474, %v473
      %v489 = vpack.c.b16 %v476, %v475
      %v490 = vpack.c.b16 %v478, %v477
      %v491 = vpack.c.b16 %v480, %v479
      %v492 = vpack.c.b16 %v482, %v481
      %v493 = vpack.c.b16 %v484, %v483
      %v494 = vpack.c.b16 %v486, %v485
      %503 = vmatprep.subr.bf16.mxu0 0
      %504 = vmatpush1.bf16.msra.mxu0 %v494
      %505 = vmatprep.subr.bf16.mxu0 0
      %506 = vmatpush1.bf16.msra.mxu0 %v493
      %507 = vmatprep.subr.bf16.mxu0 0
      %508 = vmatpush1.bf16.msra.mxu0 %v492
      %509 = vmatprep.subr.bf16.mxu0 0
      %510 = vmatpush1.bf16.msra.mxu0 %v491
      %511 = vmatprep.subr.bf16.mxu0 0
      %512 = vmatpush1.bf16.msra.mxu0 %v490
      %513 = vmatprep.subr.bf16.mxu0 0
      %514 = vmatpush1.bf16.msra.mxu0 %v489
      %515 = vmatprep.subr.bf16.mxu0 0
      %516 = vmatpush1.bf16.msra.mxu0 %v488
      %517 = vmatprep.subr.bf16.mxu0 0
      %518 = vmatpush1.bf16.msra.mxu0 %v487
      %519 = vmatprep.subr.bf16.mxu0 0
      %520 = vmatpush2.bf16.msra.mxu0 0
      %521 = vmatprep.subr.bf16.mxu0 0
      %522 = vmatpush2.bf16.msra.mxu0 0
      %523 = vmatprep.subr.bf16.mxu0 0
      %524 = vmatpush2.bf16.msra.mxu0 0
      %525 = vmatprep.subr.bf16.mxu0 0
      %526 = vmatpush2.bf16.msra.mxu0 0
      %527 = vmatprep.subr.bf16.mxu0 0
      %528 = vmatpush2.bf16.msra.mxu0 0
      %529 = vmatprep.subr.bf16.mxu0 0
      %530 = vmatpush2.bf16.msra.mxu0 0
      %531 = vmatprep.subr.bf16.mxu0 0
      %532 = vmatpush2.bf16.msra.mxu0 0
      %533 = vmatprep.subr.bf16.mxu0 0
      %534 = vmatpush2.bf16.msra.mxu0 0
      %535 = vmatprep.mubr.bf16.mxu0 0
      %536 = vmatmul.mubr.bf16.gmra.mxu0 %v332
      %v537 = vpop.f32.mrf.mxu0
      %v538 = vadd.f32 %v449, %v537
      %v539 = vpop.f32.mrf.mxu0
      %v540 = vpop.f32.mrf.mxu0
      %v541 = vadd.f32 %v452, %v540
      %v542 = vpop.f32.mrf.mxu0
      %543 = vdwg.mxu0
      %v544 = vpack.c.bf16 %v331, %v330
      %v545 = vld [vmem:[%s1 + $0x80] sm:$0xf]
      %v546 = vld [vmem:[%s1 + $0x84] sm:$0xf]
      %v547 = vld [vmem:[%s1 + $0x88] sm:$0xf]
      %v548 = vld [vmem:[%s1 + $0x8c] sm:$0xf]
      %v549 = vld [vmem:[%s1 + $0x90] sm:$0xf]
      %v550 = vld [vmem:[%s1 + $0x94] sm:$0xf]
      %v551 = vld [vmem:[%s1 + $0x98] sm:$0xf]
      %v552 = vld [vmem:[%s1 + $0x9c] sm:$0xf]
      %v553 = vld [vmem:[%s1 + $0xa0] sm:$0xf]
      %v554 = vld [vmem:[%s1 + $0xa4] sm:$0xf]
      %v555 = vld [vmem:[%s1 + $0xa8] sm:$0xf]
      %v556 = vld [vmem:[%s1 + $0xac] sm:$0xf]
      %v557 = vld [vmem:[%s1 + $0xb0] sm:$0xf]
      %v558 = vld [vmem:[%s1 + $0xb4] sm:$0xf]
      %v559 = vld [vmem:[%s1 + $0xb8] sm:$0xf]
      %v560 = vld [vmem:[%s1 + $0xbc] sm:$0xf]
      %v577 = vunpack.c.l.b16 %v545
      %v578 = vunpack.c.l.b16 %v546
      %v579 = vunpack.c.l.b16 %v547
      %v580 = vunpack.c.l.b16 %v548
      %v581 = vunpack.c.l.b16 %v549
      %v582 = vunpack.c.l.b16 %v550
      %v583 = vunpack.c.l.b16 %v551
      %v584 = vunpack.c.l.b16 %v552
      %v585 = vunpack.c.l.b16 %v553
      %v586 = vunpack.c.l.b16 %v554
      %v587 = vunpack.c.l.b16 %v555
      %v588 = vunpack.c.l.b16 %v556
      %v589 = vunpack.c.l.b16 %v557
      %v590 = vunpack.c.l.b16 %v558
      %v591 = vunpack.c.l.b16 %v559
      %v592 = vunpack.c.l.b16 %v560
      %v593 = vpack.c.b16 %v578, %v577
      %v594 = vpack.c.b16 %v580, %v579
      %v595 = vpack.c.b16 %v582, %v581
      %v596 = vpack.c.b16 %v584, %v583
      %v597 = vpack.c.b16 %v586, %v585
      %v598 = vpack.c.b16 %v588, %v587
      %v599 = vpack.c.b16 %v590, %v589
      %v600 = vpack.c.b16 %v592, %v591
      %609 = vmatprep.subr.bf16.mxu0 0
      %610 = vmatpush1.bf16.msra.mxu0 %v600
      %611 = vmatprep.subr.bf16.mxu0 0
      %612 = vmatpush1.bf16.msra.mxu0 %v599
      %613 = vmatprep.subr.bf16.mxu0 0
      %614 = vmatpush1.bf16.msra.mxu0 %v598
      %615 = vmatprep.subr.bf16.mxu0 0
      %616 = vmatpush1.bf16.msra.mxu0 %v597
      %617 = vmatprep.subr.bf16.mxu0 0
      %618 = vmatpush1.bf16.msra.mxu0 %v596
      %619 = vmatprep.subr.bf16.mxu0 0
      %620 = vmatpush1.bf16.msra.mxu0 %v595
      %621 = vmatprep.subr.bf16.mxu0 0
      %622 = vmatpush1.bf16.msra.mxu0 %v594
      %623 = vmatprep.subr.bf16.mxu0 0
      %624 = vmatpush1.bf16.msra.mxu0 %v593
      %625 = vmatprep.subr.bf16.mxu0 0
      %626 = vmatpush2.bf16.msra.mxu0 0
      %627 = vmatprep.subr.bf16.mxu0 0
      %628 = vmatpush2.bf16.msra.mxu0 0
      %629 = vmatprep.subr.bf16.mxu0 0
      %630 = vmatpush2.bf16.msra.mxu0 0
      %631 = vmatprep.subr.bf16.mxu0 0
      %632 = vmatpush2.bf16.msra.mxu0 0
      %633 = vmatprep.subr.bf16.mxu0 0
      %634 = vmatpush2.bf16.msra.mxu0 0
      %635 = vmatprep.subr.bf16.mxu0 0
      %636 = vmatpush2.bf16.msra.mxu0 0
      %637 = vmatprep.subr.bf16.mxu0 0
      %638 = vmatpush2.bf16.msra.mxu0 0
      %639 = vmatprep.subr.bf16.mxu0 0
      %640 = vmatpush2.bf16.msra.mxu0 0
      %641 = vmatprep.mubr.bf16.mxu0 0
      %642 = vmatmul.mubr.bf16.gmra.mxu0 %v544
      %v643 = vpop.f32.mrf.mxu0
      %v644 = vadd.f32 0.0, %v643
      %v645 = vpop.f32.mrf.mxu0
      %v646 = vpop.f32.mrf.mxu0
      %v647 = vadd.f32 0.0, %v646
      %v648 = vpop.f32.mrf.mxu0
      %649 = vdwg.mxu0
      %v650 = vadd.f32 %v538, %v644
      %v651 = vadd.f32 %v541, %v647
      %652 = vst [vmem:[%s248] sm:$0xff] %v650
      %653 = vst [vmem:[%s248 + $0x8] sm:$0xff] %v651
      %v654 = vld [vmem:[%s5] sm:$0x1]
      %v655 = vadd.f32 %v650, %v651
      %v656 = vrot.slane %v655, 4
      %v657 = vadd.f32 %v655, %v656
      %v658 = vrot.slane %v657, 2
      %v659 = vadd.f32 %v657, %v658
      %v660 = vrot.slane %v659, 1
      %v661 = vadd.f32 %v659, %v660
      %v662 = vadd.f32 %v654, %v661
      %663 = vst [vmem:[%s5] sm:$0x1] %v662
      %v664 = vld [vmem:[%s6] sm:$0x1]
      %v665 = vmul.f32 %v650, %v650
      %v666 = vmul.f32 %v651, %v651
      %v667 = vadd.f32 %v665, %v666
      %v668 = vrot.slane %v667, 4
      %v669 = vadd.f32 %v667, %v668
      %v670 = vrot.slane %v669, 2
      %v671 = vadd.f32 %v669, %v670
      %v672 = vrot.slane %v671, 1
      %v673 = vadd.f32 %v671, %v672
      %v674 = vadd.f32 %v664, %v673
      %675 = vst [vmem:[%s6] sm:$0x1] %v674
      %s676 = smul.u32 2, %s18
      %p677 = scmp.lt.s32.totalorder %s676, 3
      %s678 = scalar_select %p677, %s676, 3
      %s679 = smul.addr %s678, 8
      %s680 = scalar_lea.vmem %s4, %s679
      // Predicated region
      $region41: #{resblock.4} parent=35 // pred_check
        %p681 = pneg %p125
      $region42: #{resblock.4} parent=35 // pred_check_branch
        %683 = sbr.rel (%p681) target = $region44
      $region43: #{resblock.4} parent=35 // pred_region
        %s684 = smul.u32 2, %s18
      $region44: #{resblock.4} parent=35 // pred_fallthru
        _
      // Predicated region
      $region45: #{resblock.4} parent=35 // pred_check
        %p685 = pneg %p146
      $region46: #{resblock.4} parent=35 // pred_check_branch
        %687 = sbr.rel (%p685) target = $region48
      $region47: #{resblock.4} parent=35 // pred_region
        _
      $region48: #{resblock.4} parent=35 // pred_fallthru
        _
      // Predicated region
      $region49: #{resblock.4} parent=35 // pred_check
        %p688 = pneg %p167
      $region50: #{resblock.4} parent=35 // pred_check_branch
        %690 = sbr.rel (%p688) target = $region52
      $region51: #{resblock.4} parent=35 // pred_region
        _
      $region52: #{resblock.4} parent=35 // pred_fallthru
        _
      // Predicated region
      $region53: #{resblock.4} parent=35 // pred_check
        %p691 = pneg %p146
      $region54: #{resblock.4} parent=35 // pred_check_branch
        %693 = sbr.rel (%p691) target = $region56
      $region55: #{resblock.4} parent=35 // pred_region
        _
      $region56: #{resblock.4} parent=35 // pred_fallthru
        _
      // Predicated region
      $region57: #{resblock.4} parent=35 // pred_check
        %p694 = pneg %p167
      $region58: #{resblock.4} parent=35 // pred_check_branch
        %696 = sbr.rel (%p694) target = $region60
      $region59: #{resblock.4} parent=35 // pred_region
        _
      $region60: #{resblock.4} parent=35 // pred_fallthru
        _
    $region36: #{resblock.4} parent=5 // pred_fallthru
      _
    %p697 = scmp.le.s32.totalorder 2, %s13
    // Predicated region
    $region61: #{resblock.4} parent=5 // pred_check
      %p698 = pneg %p697
    $region62: #{resblock.4} parent=5 // pred_check_branch
      %700 = sbr.rel (%p698) target = $region64
    $region63: #{resblock.4} parent=5 // pred_region
      %s701 = ssub.s32 %s13, 2
      // Predicated region
      $region65: #{resblock.4} parent=63 // pred_check
        %p702 = pneg %p131
      $region66: #{resblock.4} parent=63 // pred_check_branch
        %704 = sbr.rel (%p702) target = $region68
      $region67: #{resblock.4} parent=63 // pred_region
        %s705 = smul.u32 2, %s19
        %p706 = scmp.lt.s32.totalorder %s705, 3
        %s707 = scalar_select %p706, %s705, 3
        %s708 = smul.addr %s707, 8
        %s709 = scalar_lea.vmem %s4, %s708
      $region68: #{resblock.4} parent=63 // pred_fallthru
        _
    $region64: #{resblock.4} parent=5 // pred_fallthru
      _
  $region6: #{resblock.4} parent=0 // loop_footer
    %s17 = sadd.s32 1, %s13
  $region7: #{resblock.4} parent=0 // loop_footer_branch
    %12 = sbr.rel target = $region3
  $region8: #{resblock.4} parent=0 // loop_exit
    _

// kernel: resblock.5
$region0: #{resblock.5}
  #allocation0 [shape = 'u32[]', space=smem, size = 0x4, offset = 0x4, fixed_abs, tag = 'smem constant byte address 0x4 - core index']
  #allocation1 [shape = 'u32[144,128]{1,0:T(1,128)}', space=vmem, size = 0x12000, scoped, tag = 'internal scratch']
  %s0 = inlined_call_operand.vmem [shape: f32[32,128], index: 0, kind: input, shape index: {}]
  %s1 = inlined_call_operand.vmem [shape: f32[32,128], index: 1, kind: input, shape index: {}]
  %s2 = inlined_call_operand.vmem [shape: f32[1,128], index: 2, kind: input, shape index: {}]
  %s3 = inlined_call_operand.vmem [shape: f32[1,128], index: 3, kind: input, shape index: {}]
  %s4 = inlined_call_operand.vmem [shape: f32[32,128], index: 4, kind: output, shape index: {}]
  %s5 = sld [smem:[#allocation0]]
  $region49: #{resblock.5} parent=0
    _
  %s7 = ssub.s32 1, %s5
  %s8 = scalar_select 0, %s7, %s5
  loop: start=0, step=1, limit=4
  $region2: #{resblock.5} parent=0 // loop_pre_header
    _
  $region3: #{resblock.5} parent=0 // loop_header
    %s10 = sphi 0, %s14
    %p11 = scmp.ge.s32.totalorder %s10, 4
    %s20 = sphi 0, %s22
    %s23 = sphi 0, %s20
    %s24 = sphi 0, %s23
    %s40 = sphi 0, %s24
    %s46 = sphi 0, %s48
    %s49 = sphi 0, %s46
    %s50 = sphi 0, %s49
    %s66 = sphi 0, %s50
    %s70 = sphi 0, %s70
    %s72 = sphi 0, %s70
    %s73 = sphi 0, %s72
    %s87 = sphi 0, %s73
    %s91 = sphi 0, %s91
    %s93 = sphi 0, %s91
    %s94 = sphi 0, %s93
    %s108 = sphi 0, %s94
    %s114 = sphi 0, %s116
    %s117 = sphi 0, %s114
    %s118 = sphi 0, %s117
    %s134 = sphi 0, %s118
  $region4: #{resblock.5} parent=0 // loop_header_branch
    %13 = sbr.rel (%p11) target = $region8
  $region5: #{resblock.5} parent=0 // loop_body
    %s15 = ssub.s32 %s10, 1
    %s16 = ssub.s32 %s10, 2
    %s17 = sadd.s32 %s10, 1
    %s18 = ssub.s32 %s10, %s17
    %p19 = scmp.eq.s32.totalorder %s18, 0
    %s21 = sadd.s32 %s20, 1
    %s22 = scalar_select %p19, %s20, %s21
    %p25 = pneg %p19
    %p26 = scmp.eq.s32.totalorder %s10, 1
    %p27 = por %p25, %p26
    %p28 = scmp.ne.s32.totalorder %s20, %s23
    %p29 = scmp.eq.s32.totalorder %s10, 0
    %p30 = por %p28, %p29
    %p31 = scmp.ne.s32.totalorder %s20, %s23
    %p32 = scmp.eq.s32.totalorder %s15, 1
    %p33 = por %p31, %p32
    %p34 = scmp.ne.s32.totalorder %s23, %s24
    %p35 = scmp.eq.s32.totalorder %s15, 0
    %p36 = por %p34, %p35
    %p37 = scmp.ne.s32.totalorder %s23, %s24
    %p38 = scmp.eq.s32.totalorder %s16, 1
    %p39 = por %p37, %p38
    %p41 = scmp.ne.s32.totalorder %s24, %s40
    %p42 = scmp.eq.s32.totalorder %s16, 0
    %p43 = por %p41, %p42
    %s44 = ssub.s32 %s10, %s17
    %p45 = scmp.eq.s32.totalorder %s44, 0
    %s47 = sadd.s32 %s46, 1
    %s48 = scalar_select %p45, %s46, %s47
    %p51 = pneg %p45
    %p52 = scmp.eq.s32.totalorder %s10, 1
    %p53 = por %p51, %p52
    %p54 = scmp.ne.s32.totalorder %s46, %s49
    %p55 = scmp.eq.s32.totalorder %s10, 0
    %p56 = por %p54, %p55
    %p57 = scmp.ne.s32.totalorder %s46, %s49
    %p58 = scmp.eq.s32.totalorder %s15, 1
    %p59 = por %p57, %p58
    %p60 = scmp.ne.s32.totalorder %s49, %s50
    %p61 = scmp.eq.s32.totalorder %s15, 0
    %p62 = por %p60, %p61
    %p63 = scmp.ne.s32.totalorder %s49, %s50
    %p64 = scmp.eq.s32.totalorder %s16, 1
    %p65 = por %p63, %p64
    %p67 = scmp.ne.s32.totalorder %s50, %s66
    %p68 = scmp.eq.s32.totalorder %s16, 0
    %p69 = por %p67, %p68
    %s71 = sadd.s32 %s70, 1
    %p74 = scmp.eq.s32.totalorder %s10, 1
    %p75 = scmp.ne.s32.totalorder %s70, %s72
    %p76 = scmp.eq.s32.totalorder %s10, 0
    %p77 = por %p75, %p76
    %p78 = scmp.ne.s32.totalorder %s70, %s72
    %p79 = scmp.eq.s32.totalorder %s15, 1
    %p80 = por %p78, %p79
    %p81 = scmp.ne.s32.totalorder %s72, %s73
    %p82 = scmp.eq.s32.totalorder %s15, 0
    %p83 = por %p81, %p82
    %p84 = scmp.ne.s32.totalorder %s72, %s73
    %p85 = scmp.eq.s32.totalorder %s16, 1
    %p86 = por %p84, %p85
    %p88 = scmp.ne.s32.totalorder %s73, %s87
    %p89 = scmp.eq.s32.totalorder %s16, 0
    %p90 = por %p88, %p89
    %s92 = sadd.s32 %s91, 1
    %p95 = scmp.eq.s32.totalorder %s10, 1
    %p96 = scmp.ne.s32.totalorder %s91, %s93
    %p97 = scmp.eq.s32.totalorder %s10, 0
    %p98 = por %p96, %p97
    %p99 = scmp.ne.s32.totalorder %s91, %s93
    %p100 = scmp.eq.s32.totalorder %s15, 1
    %p101 = por %p99, %p100
    %p102 = scmp.ne.s32.totalorder %s93, %s94
    %p103 = scmp.eq.s32.totalorder %s15, 0
    %p104 = por %p102, %p103
    %p105 = scmp.ne.s32.totalorder %s93, %s94
    %p106 = scmp.eq.s32.totalorder %s16, 1
    %p107 = por %p105, %p106
    %p109 = scmp.ne.s32.totalorder %s94, %s108
    %p110 = scmp.eq.s32.totalorder %s16, 0
    %p111 = por %p109, %p110
    %s112 = ssub.s32 %s10, %s17
    %p113 = scmp.eq.s32.totalorder %s112, 0
    %s115 = sadd.s32 %s114, 1
    %s116 = scalar_select %p113, %s114, %s115
    %p119 = pneg %p113
    %p120 = scmp.eq.s32.totalorder %s10, 1
    %p121 = por %p119, %p120
    %p122 = scmp.ne.s32.totalorder %s114, %s117
    %p123 = scmp.eq.s32.totalorder %s10, 0
    %p124 = por %p122, %p123
    %p125 = scmp.ne.s32.totalorder %s114, %s117
    %p126 = scmp.eq.s32.totalorder %s15, 1
    %p127 = por %p125, %p126
    %p128 = scmp.ne.s32.totalorder %s117, %s118
    %p129 = scmp.eq.s32.totalorder %s15, 0
    %p130 = por %p128, %p129
    %p131 = scmp.ne.s32.totalorder %s117, %s118
    %p132 = scmp.eq.s32.totalorder %s16, 1
    %p133 = por %p131, %p132
    %p135 = scmp.ne.s32.totalorder %s118, %s134
    %p136 = scmp.eq.s32.totalorder %s16, 0
    %p137 = por %p135, %p136
    %p138 = scmp.le.s32.totalorder 1, %s10
    %p139 = scmp.lt.s32.totalorder %s10, 3
    %p140 = pnand %p138, %p139
    %p141 = pneg %p140
    // Predicated region
    $region9: #{resblock.5} parent=5 // pred_check
      _
    $region10: #{resblock.5} parent=5 // pred_check_branch
      %143 = sbr.rel (%p140) target = $region12
    $region11: #{resblock.5} parent=5 // pred_region
      %s144 = ssub.s32 %s10, 1
      // Predicated region
      $region13: #{resblock.5} parent=11 // pred_check
        %p145 = pneg %p83
      $region14: #{resblock.5} parent=11 // pred_check_branch
        %147 = sbr.rel (%p145) target = $region16
      $region15: #{resblock.5} parent=11 // pred_region
        _
      $region16: #{resblock.5} parent=11 // pred_fallthru
        _
      // Predicated region
      $region17: #{resblock.5} parent=11 // pred_check
        %p148 = pneg %p104
      $region18: #{resblock.5} parent=11 // pred_check_branch
        %150 = sbr.rel (%p148) target = $region20
      $region19: #{resblock.5} parent=11 // pred_region
        _
      $region20: #{resblock.5} parent=11 // pred_fallthru
        _
    $region12: #{resblock.5} parent=5 // pred_fallthru
      _
    %p151 = scmp.lt.s32.totalorder %s10, 2
    // Predicated region
    $region21: #{resblock.5} parent=5 // pred_check
      %p152 = pneg %p151
    $region22: #{resblock.5} parent=5 // pred_check_branch
      %154 = sbr.rel (%p152) target = $region24
    $region23: #{resblock.5} parent=5 // pred_region
      // Predicated region
      $region25: #{resblock.5} parent=23 // pred_check
        %p155 = pneg %p30
      $region26: #{resblock.5} parent=23 // pred_check_branch
        %157 = sbr.rel (%p155) target = $region28
      $region27: #{resblock.5} parent=23 // pred_region
        %s158 = smul.u32 2, %s10
        %p159 = scmp.lt.s32.totalorder %s158, 3
        %s160 = scalar_select %p159, %s158, 3
        %s161 = smul.addr %s160, 8
        %s162 = scalar_lea.vmem %s0, %s161
        %s163 = smul.u32 2, %s10
      $region28: #{resblock.5} parent=23 // pred_fallthru
        _
      // Predicated region
      $region29: #{resblock.5} parent=23 // pred_check
        %p164 = pneg %p56
      $region30: #{resblock.5} parent=23 // pred_check_branch
        %166 = sbr.rel (%p164) target = $region32
      $region31: #{resblock.5} parent=23 // pred_region
        %s167 = smul.u32 2, %s10
        %p168 = scmp.lt.s32.totalorder %s167, 3
        %s169 = scalar_select %p168, %s167, 3
        %s170 = smul.addr %s169, 8
        %s171 = scalar_lea.vmem %s1, %s170
        %s172 = smul.u32 2, %s10
      $region32: #{resblock.5} parent=23 // pred_fallthru
        _
    $region24: #{resblock.5} parent=5 // pred_fallthru
      _
    %p173 = scmp.le.s32.totalorder 1, %s10
    %p174 = scmp.lt.s32.totalorder %s10, 3
    %p175 = pnand %p173, %p174
    %p176 = pneg %p175
    // Predicated region
    $region33: #{resblock.5} parent=5 // pred_check
      _
    $region34: #{resblock.5} parent=5 // pred_check_branch
      %178 = sbr.rel (%p175) target = $region36
    $region35: #{resblock.5} parent=5 // pred_region
      %s179 = ssub.s32 %s10, 1
      %s180 = smul.u32 2, %s15
      %p181 = scmp.lt.s32.totalorder %s180, 3
      %s182 = scalar_select %p181, %s180, 3
      %s183 = smul.addr %s182, 8
      %s184 = scalar_lea.vmem %s0, %s183
      %p185 = pneg %p36
      %p186 = pneg %p33
      %s187 = smul.u32 2, %s15
      %p188 = scmp.lt.s32.totalorder %s187, 3
      %s189 = scalar_select %p188, %s187, 3
      %s190 = smul.addr %s189, 8
      %s191 = scalar_lea.vmem %s1, %s190
      %p192 = pneg %p62
      %p193 = pneg %p59
      %p194 = pneg %p83
      %p195 = pneg %p80
      %p196 = pneg %p104
      %p197 = pneg %p101
      %p198 = pneg %p130
      %p199 = pneg %p127
      %s200 = smul.u32 2, %s15
      %p201 = scmp.lt.s32.totalorder %s200, 3
      %s202 = scalar_select %p201, %s200, 3
      %s203 = smul.addr %s202, 8
      %s204 = scalar_lea.vmem %s4, %s203
      %s205 = smul.u32 2, %s15
      %p206 = scmp.lt.s32.totalorder %s205, 3
      %s207 = scalar_select %p206, %s205, 3
      %s208 = smul.addr %s207, 8
      %s209 = scalar_lea.vmem %s0, %s208
      %s210 = smul.u32 2, %s15
      %s211 = smul.u32 2, %s15
      %p212 = scmp.lt.s32.totalorder %s211, 3
      %s213 = scalar_select %p212, %s211, 3
      %s214 = smul.addr %s213, 8
      %s215 = scalar_lea.vmem %s1, %s214
      %s216 = smul.u32 2, %s15
      %s217 = smul.u32 2, %s15
      %p218 = scmp.lt.s32.totalorder %s217, 3
      %s219 = scalar_select %p218, %s217, 3
      %s220 = smul.addr %s219, 8
      %s221 = scalar_lea.vmem %s4, %s220
      %s222 = smul.u32 2, %s15
      %v223 = vld [vmem:[%s209] sm:$0xff]
      %v224 = vld [vmem:[%s209 + $0x8] sm:$0xff]
      %v225 = vld [vmem:[%s2] sm:$0x1]
      %v227 = vlaneseq
      %v228 = vshrl.u32 %v227, 7
      %v229 = vsub.s32 0, %v228
      %v230 = vrot.slane %v225, %v229
      %v232 = vmul.f32 %v223, %v230
      %v233 = vmul.f32 %v224, %v230
      %v234 = vld [vmem:[%s3] sm:$0x1]
      %v236 = vlaneseq
      %v237 = vshrl.u32 %v236, 7
      %v238 = vsub.s32 0, %v237
      %v239 = vrot.slane %v234, %v238
      %v241 = vadd.f32 %v232, %v239
      %v242 = vadd.f32 %v233, %v239
      %v243 = vld [vmem:[%s215] sm:$0xff]
      %v244 = vld [vmem:[%s215 + $0x8] sm:$0xff]
      %v245 = vadd.f32 %v241, %v243
      %v246 = vadd.f32 %v242, %v244
      %v247 = vmax.f32 %v245, 0.0
      %v248 = vmax.f32 %v246, 0.0
      %249 = vst [vmem:[%s221] sm:$0xff] %v247
      %250 = vst [vmem:[%s221 + $0x8] sm:$0xff] %v248
      %s251 = smul.u32 2, %s15
      %p252 = scmp.lt.s32.totalorder %s251, 3
      %s253 = scalar_select %p252, %s251, 3
      %s254 = smul.addr %s253, 8
      %s255 = scalar_lea.vmem %s4, %s254
      // Predicated region
      $region37: #{resblock.5} parent=35 // pred_check
        %p256 = pneg %p127
      $region38: #{resblock.5} parent=35 // pred_check_branch
        %258 = sbr.rel (%p256) target = $region40
      $region39: #{resblock.5} parent=35 // pred_region
        %s259 = smul.u32 2, %s15
      $region40: #{resblock.5} parent=35 // pred_fallthru
        _
    $region36: #{resblock.5} parent=5 // pred_fallthru
      _
    %p260 = scmp.le.s32.totalorder 2, %s10
    // Predicated region
    $region41: #{resblock.5} parent=5 // pred_check
      %p261 = pneg %p260
    $region42: #{resblock.5} parent=5 // pred_check_branch
      %263 = sbr.rel (%p261) target = $region44
    $region43: #{resblock.5} parent=5 // pred_region
      %s264 = ssub.s32 %s10, 2
      // Predicated region
      $region45: #{resblock.5} parent=43 // pred_check
        %p265 = pneg %p133
      $region46: #{resblock.5} parent=43 // pred_check_branch
        %267 = sbr.rel (%p265) target = $region48
      $region47: #{resblock.5} parent=43 // pred_region
        %s268 = smul.u32 2, %s16
        %p269 = scmp.lt.s32.totalorder %s268, 3
        %s270 = scalar_select %p269, %s268, 3
        %s271 = smul.addr %s270, 8
        %s272 = scalar_lea.vmem %s4, %s271
      $region48: #{resblock.5} parent=43 // pred_fallthru
        _
    $region44: #{resblock.5} parent=5 // pred_fallthru
      _
  $region6: #{resblock.5} parent=0 // loop_footer
    %s14 = sadd.s32 1, %s10
  $region7: #{resblock.5} parent=0 // loop_footer_branch
    %9 = sbr.rel target = $region3
  $region8: #{resblock.5} parent=0 // loop_exit
    _

</llo_original>
